<compile_context>
chip_gen: v7x
topology: tpu7x:2x2x1
jax: 0.10.0
libtpu: 0.0.40
codegen_flags: <defaults>
</compile_context>

<pallas_src>
import functools

import jax
import jax.numpy as jnp
from jax.experimental import pallas as pl
from jax.experimental.pallas import tpu as pltpu

LEAKY_SLOPE = 0.2
BN_EPS = 1e-5
LANE = 128        # lane width / MXU column alignment
SUBLANE = 8
ROW_ALIGN = 16    # row-tile alignment (safe for bf16 sublane packing)
VMEM_BUDGET = 16 * 1024 * 1024   # conservative: fits v5e/v6e/v7x scoped VMEM
VMEM_LIMIT = 32 * 1024 * 1024


def _round_up(x, m):
    return (x + m - 1) // m * m


def _leaky(y):
    return jnp.where(y >= 0.0, y, LEAKY_SLOPE * y)


# ----------------------------------------------------------------------------
# Pallas kernels
# ----------------------------------------------------------------------------
def _conv_bias_kernel(x_ref, w_ref, b_ref, o_ref, *, use_act):
    # x_ref: (TM, K_pad) bf16   w_ref: (K_pad, OC_pad) bf16   b_ref: (1, OC_pad) f32
    y = jnp.dot(x_ref[...], w_ref[...], preferred_element_type=jnp.float32)
    y = y + b_ref[...]
    if use_act:
        y = _leaky(y)
    o_ref[...] = y.astype(o_ref.dtype)


def _conv_stats_kernel(x_ref, w_ref, y_ref, stats_ref):
    # Conv matmul tile + per-tile partial BN statistics (sum, sum of squares).
    y = jnp.dot(x_ref[...], w_ref[...], preferred_element_type=jnp.float32)
    y_ref[...] = y
    s = jnp.sum(y, axis=0, keepdims=True)        # (1, OC_pad)
    ss = jnp.sum(y * y, axis=0, keepdims=True)   # (1, OC_pad)
    row = jax.lax.broadcasted_iota(jnp.int32, (SUBLANE, y.shape[1]), 0)
    stats_ref[...] = jnp.where(row == 0, s, jnp.where(row == 1, ss, 0.0))


def _bn_act_kernel(y_ref, scale_ref, shift_ref, o_ref, *, use_act):
    # y_ref: (TM, OC_pad) f32; scale/shift: (1, OC_pad) f32 (precomputed stats).
    y = y_ref[...] * scale_ref[...] + shift_ref[...]
    if use_act:
        y = _leaky(y)
    o_ref[...] = y.astype(o_ref.dtype)


# ----------------------------------------------------------------------------
# Glue: im2col (NHWC), tile-size selection, layer wrapper
# ----------------------------------------------------------------------------
def _pick_tm(rows, k_pad, oc_pad):
    """Largest row tile (multiple of 16) whose working set fits the VMEM budget."""
    resident = 2 * k_pad * oc_pad * 2 + 4 * oc_pad * 4       # weights + vectors
    per_row = 2 * k_pad * 2 + 2 * oc_pad * 4                  # dbl-buffered in/out
    tm = (VMEM_BUDGET - resident) // per_row
    tm = max(ROW_ALIGN, min(1024, (tm // ROW_ALIGN) * ROW_ALIGN))
    return min(tm, _round_up(rows, ROW_ALIGN))


def _im2col_nhwc(x, k, s, p):
    """x: (N, H, W, C) -> rows (N*OH*OW, k*k*C) in (kh, kw, c) column order."""
    n, h, w, c = x.shape
    xp = jnp.pad(x, ((0, 0), (p, p), (p, p), (0, 0)))
    oh = (h + 2 * p - k) // s + 1
    ow = (w + 2 * p - k) // s + 1
    patches = []
    for kh in range(k):
        for kw in range(k):
            patches.append(xp[:, kh: kh + s * oh: s, kw: kw + s * ow: s, :])
    cols = jnp.stack(patches, axis=3).reshape(n * oh * ow, k * k * c)
    return cols, oh, ow


def _compiler_params():
    return pltpu.CompilerParams(
        dimension_semantics=("parallel",), vmem_limit_bytes=VMEM_LIMIT)


def _conv_layer(x_nhwc, cfg, p, out_dtype):
    """Conv2d(k=4, stride, pad=1) [+ BatchNorm] [+ LeakyReLU(0.2)], NHWC in/out."""
    n = x_nhwc.shape[0]
    weight = p["weight"]                       # (OC, IC, 4, 4) — PyTorch OIHW
    oc, ic, kk, _ = weight.shape
    stride = cfg["stride"]

    cols, oh, ow = _im2col_nhwc(x_nhwc.astype(jnp.bfloat16), kk, stride, 1)
    rows, k = cols.shape
    k_pad = _round_up(k, LANE)
    oc_pad = _round_up(oc, LANE)
    tm = _pick_tm(rows, k_pad, oc_pad)
    r_pad = _round_up(rows, tm)
    n_tiles = r_pad // tm

    cols = jnp.pad(cols, ((0, r_pad - rows), (0, k_pad - k)))
    w_col = jnp.transpose(weight, (2, 3, 1, 0)).reshape(k, oc).astype(jnp.bfloat16)
    w_col = jnp.pad(w_col, ((0, k_pad - k), (0, oc_pad - oc)))

    x_spec = pl.BlockSpec((tm, k_pad), lambda i: (i, 0))
    w_spec = pl.BlockSpec((k_pad, oc_pad), lambda i: (0, 0))      # resident weights
    vec_spec = pl.BlockSpec((1, oc_pad), lambda i: (0, 0))
    row_spec = pl.BlockSpec((tm, oc_pad), lambda i: (i, 0))

    flops = 2 * r_pad * k_pad * oc_pad
    bytes_io = cols.size * 2 + w_col.size * 2 + r_pad * oc_pad * 4
    cost = pl.CostEstimate(flops=flops, transcendentals=0, bytes_accessed=bytes_io)

    if not cfg["norm"]:
        bias = jnp.pad(p["bias"].astype(jnp.float32), (0, oc_pad - oc))
        bias = bias.reshape(1, oc_pad)
        y = pl.pallas_call(
            functools.partial(_conv_bias_kernel, use_act=cfg["act"]),
            grid=(n_tiles,),
            in_specs=[x_spec, w_spec, vec_spec],
            out_specs=row_spec,
            out_shape=jax.ShapeDtypeStruct((r_pad, oc_pad), out_dtype),
            compiler_params=_compiler_params(),
            cost_estimate=cost,
        )(cols, w_col, bias)
    else:
        # Phase 1: tiled conv matmul + per-tile partial sums / sums-of-squares.
        y_f32, stats = pl.pallas_call(
            _conv_stats_kernel,
            grid=(n_tiles,),
            in_specs=[x_spec, w_spec],
            out_specs=(row_spec, pl.BlockSpec((SUBLANE, oc_pad), lambda i: (i, 0))),
            out_shape=(
                jax.ShapeDtypeStruct((r_pad, oc_pad), jnp.float32),
                jax.ShapeDtypeStruct((n_tiles * SUBLANE, oc_pad), jnp.float32),
            ),
            compiler_params=_compiler_params(),
            cost_estimate=cost,
        )(cols, w_col)

        # Cross-tile BN statistics (training mode, biased variance over N*OH*OW).
        # Zero-padded rows/columns contribute exactly zero to both partial sums.
        st = stats.reshape(n_tiles, SUBLANE, oc_pad)
        total = jnp.sum(st[:, 0, :], axis=0)
        total_sq = jnp.sum(st[:, 1, :], axis=0)
        count = float(rows)
        mean = total / count
        var = jnp.maximum(total_sq / count - mean * mean, 0.0)
        inv = jax.lax.rsqrt(var + BN_EPS)
        gamma = jnp.pad(p["gamma"].astype(jnp.float32), (0, oc_pad - oc))
        beta = jnp.pad(p["beta"].astype(jnp.float32), (0, oc_pad - oc))
        scale = (gamma * inv).reshape(1, oc_pad)
        shift = (beta - mean * gamma * inv).reshape(1, oc_pad)

        # Phase 2: normalize + affine + LeakyReLU, tiled over rows.
        y = pl.pallas_call(
            functools.partial(_bn_act_kernel, use_act=cfg["act"]),
            grid=(n_tiles,),
            in_specs=[row_spec, vec_spec, vec_spec],
            out_specs=row_spec,
            out_shape=jax.ShapeDtypeStruct((r_pad, oc_pad), out_dtype),
            compiler_params=_compiler_params(),
        )(y_f32, scale, shift)

    # drop row/lane padding; rows are already in (n, oh, ow) order -> NHWC reshape
    return y[:rows, :oc].reshape(n, oh, ow, oc)


# ----------------------------------------------------------------------------
# Model: parameter init + forward
# ----------------------------------------------------------------------------
def init_patch_discriminator(key, input_c, n_down, num_filters):
    """Deterministic synthetic parameters matching the PyTorch module shapes."""
    cfgs = [dict(stride=2, norm=False, act=True)]
    shapes = [(input_c, num_filters)]
    for i in range(n_down):
        cfgs.append(dict(stride=1 if i == n_down - 1 else 2, norm=True, act=True))
        shapes.append((num_filters * 2 ** i, num_filters * 2 ** (i + 1)))
    cfgs.append(dict(stride=1, norm=False, act=False))
    shapes.append((num_filters * 2 ** n_down, 1))

    params = []
    for (ni, nf), cfg in zip(shapes, cfgs):
        key, kw, kb = jax.random.split(key, 3)
        p = {"weight": 0.05 * jax.random.normal(kw, (nf, ni, 4, 4), jnp.float32)}
        if cfg["norm"]:
            p["gamma"] = jnp.ones((nf,), jnp.float32)
            p["beta"] = jnp.zeros((nf,), jnp.float32)
        else:
            p["bias"] = 0.05 * jax.random.normal(kb, (nf,), jnp.float32)
        params.append(p)
    return tuple(cfgs), params


def patch_discriminator_forward(configs, params, x_nchw):
    x = jnp.transpose(x_nchw, (0, 2, 3, 1))          # NCHW -> NHWC (boundary only)
    n_layers = len(configs)
    for idx, (cfg, p) in enumerate(zip(configs, params)):
        out_dtype = jnp.float32 if idx == n_layers - 1 else jnp.bfloat16
        x = _conv_layer(x, cfg, p, out_dtype)
    return jnp.transpose(x, (0, 3, 1, 2))             # back to NCHW (boundary only)


# ----------------------------------------------------------------------------
# Pure-JAX f32 reference (PyTorch semantics) for numerical sanity check
# ----------------------------------------------------------------------------
def _reference_forward(configs, params, x):
    for cfg, p in zip(configs, params):
        s = cfg["stride"]
        y = jax.lax.conv_general_dilated(
            x, p["weight"], (s, s), [(1, 1), (1, 1)],
            dimension_numbers=("NCHW", "OIHW", "NCHW"))
        if cfg["norm"]:
            mean = jnp.mean(y, axis=(0, 2, 3), keepdims=True)
            var = jnp.mean(jnp.square(y - mean), axis=(0, 2, 3), keepdims=True)
            y = (y - mean) * jax.lax.rsqrt(var + BN_EPS)
            y = y * p["gamma"][None, :, None, None] + p["beta"][None, :, None, None]
        else:
            y = y + p["bias"][None, :, None, None]
        if cfg["act"]:
            y = jnp.where(y >= 0.0, y, LEAKY_SLOPE * y)
        x = y
    return x


# ----------------------------------------------------------------------------
if __name__ == "__main__":
    key = jax.random.PRNGKey(0)
    k_param, k_input = jax.random.split(key)

    INPUT_C, N_DOWN, NUM_FILTERS = 4, 2, 8
    configs, params = init_patch_discriminator(k_param, INPUT_C, N_DOWN, NUM_FILTERS)

    x = jax.random.normal(k_input, (2, INPUT_C, 16, 16), jnp.float32)  # NCHW

    fwd = jax.jit(functools.partial(patch_discriminator_forward, configs))
    out = jax.block_until_ready(fwd(params, x))

    ref = jax.block_until_ready(_reference_forward(configs, params, x))
    assert out.shape == ref.shape == (2, 1, 2, 2), out.shape

    # bf16 MXU operands (f32 accumulation) -> loosened tolerance vs f32 reference.
    err = float(jnp.max(jnp.abs(out.astype(jnp.float32) - ref)))
    scale = float(jnp.max(jnp.abs(ref))) + 1e-6
    assert err / scale < 5e-2, (err, scale)

    print("KERNEL_OK")
</pallas_src>

<mosaic_0001>
module attributes {stable_mosaic.version = 11 : i64} {
  func.func @_conv_bias_kernel(%arg0: i32, %arg1: memref<128x128xbf16, #tpu.memory_space<vmem>>, %arg2: memref<128x128xbf16, #tpu.memory_space<vmem>>, %arg3: memref<1x128xf32, #tpu.memory_space<vmem>>, %arg4: memref<128x128xbf16, #tpu.memory_space<vmem>>) attributes {dimension_semantics = [#tpu.dimension_semantics<parallel>], iteration_bounds = array<i64: 1>, scalar_prefetch = 0 : i64, scratch_operands = 0 : i64, tpu.core_type = #tpu.core_type<tc>, window_params = [{transform_indices = @transform_0, window_bounds = array<i64: 128, 128>}, {pipeline_mode = #tpu.pipeline_mode<synchronous>, transform_indices = @transform_1, window_bounds = array<i64: 128, 128>}, {pipeline_mode = #tpu.pipeline_mode<synchronous>, transform_indices = @transform_2, window_bounds = array<i64: 1, 128>}, {transform_indices = @transform_3, window_bounds = array<i64: 128, 128>}]} {
    %c0 = arith.constant 0 : index
    %c0_0 = arith.constant 0 : index
    %0 = vector.load %arg1[%c0, %c0_0] : memref<128x128xbf16, #tpu.memory_space<vmem>>, vector<128x128xbf16>
    %c0_1 = arith.constant 0 : index
    %c0_2 = arith.constant 0 : index
    %1 = vector.load %arg2[%c0_1, %c0_2] : memref<128x128xbf16, #tpu.memory_space<vmem>>, vector<128x128xbf16>
    %cst = arith.constant dense<0.000000e+00> : vector<128x128xf32>
    %2 = tpu.matmul %0, %1, %cst {dimension_numbers = #tpu.dot_dimension_numbers<[1], [0], [0], [1], [0, 0, 1, 1], [], []>} : vector<128x128xbf16>, vector<128x128xbf16>, vector<128x128xf32> -> vector<128x128xf32>
    %c0_3 = arith.constant 0 : index
    %c0_4 = arith.constant 0 : index
    %3 = vector.load %arg3[%c0_3, %c0_4] : memref<1x128xf32, #tpu.memory_space<vmem>>, vector<1x128xf32>
    %4 = vector.broadcast %3 : vector<1x128xf32> to vector<128x128xf32>
    %5 = arith.addf %2, %4 : vector<128x128xf32>
    %cst_5 = arith.constant 0.000000e+00 : f32
    %6 = vector.broadcast %cst_5 : f32 to vector<128x128xf32>
    %7 = arith.cmpf oge, %5, %6 : vector<128x128xf32>
    %cst_6 = arith.constant 2.000000e-01 : f32
    %8 = vector.broadcast %cst_6 : f32 to vector<128x128xf32>
    %9 = arith.mulf %8, %5 : vector<128x128xf32>
    %10 = arith.select %7, %5, %9 : vector<128x128xi1>, vector<128x128xf32>
    %11 = arith.truncf %10 : vector<128x128xf32> to vector<128x128xbf16>
    %c0_7 = arith.constant 0 : index
    %c0_8 = arith.constant 0 : index
    %12 = vector.load %arg4[%c0_7, %c0_8] : memref<128x128xbf16, #tpu.memory_space<vmem>>, vector<128x128xbf16>
    tpu.vector_store %arg4[%c0_7, %c0_8], %11 {strides = array<i32>} : memref<128x128xbf16, #tpu.memory_space<vmem>>, vector<128x128xbf16>,
    return
  }
  func.func @transform_0(%arg0: i32) -> (i32, i32) {
    %c0_i32 = arith.constant 0 : i32
    %c0_i32_0 = arith.constant 0 : i32
    return %arg0, %c0_i32 : i32, i32
  }
  func.func @transform_1(%arg0: i32) -> (i32, i32) {
    %c0_i32 = arith.constant 0 : i32
    %c0_i32_0 = arith.constant 0 : i32
    %c0_i32_1 = arith.constant 0 : i32
    return %c0_i32, %c0_i32_0 : i32, i32
  }
  func.func @transform_2(%arg0: i32) -> (i32, i32) {
    %c0_i32 = arith.constant 0 : i32
    %c0_i32_0 = arith.constant 0 : i32
    %c0_i32_1 = arith.constant 0 : i32
    return %c0_i32, %c0_i32_0 : i32, i32
  }
  func.func @transform_3(%arg0: i32) -> (i32, i32) {
    %c0_i32 = arith.constant 0 : i32
    %c0_i32_0 = arith.constant 0 : i32
    return %arg0, %c0_i32 : i32, i32
  }
}

module attributes {stable_mosaic.version = 11 : i64} {
  func.func @_bn_act_kernel(%arg0: i32, %arg1: memref<32x128xf32, #tpu.memory_space<vmem>>, %arg2: memref<1x128xf32, #tpu.memory_space<vmem>>, %arg3: memref<1x128xf32, #tpu.memory_space<vmem>>, %arg4: memref<32x128xbf16, #tpu.memory_space<vmem>>) attributes {dimension_semantics = [#tpu.dimension_semantics<parallel>], iteration_bounds = array<i64: 1>, scalar_prefetch = 0 : i64, scratch_operands = 0 : i64, tpu.core_type = #tpu.core_type<tc>, window_params = [{transform_indices = @transform_0, window_bounds = array<i64: 32, 128>}, {pipeline_mode = #tpu.pipeline_mode<synchronous>, transform_indices = @transform_1, window_bounds = array<i64: 1, 128>}, {pipeline_mode = #tpu.pipeline_mode<synchronous>, transform_indices = @transform_2, window_bounds = array<i64: 1, 128>}, {transform_indices = @transform_3, window_bounds = array<i64: 32, 128>}]} {
    %c0 = arith.constant 0 : index
    %c0_0 = arith.constant 0 : index
    %0 = vector.load %arg1[%c0, %c0_0] : memref<32x128xf32, #tpu.memory_space<vmem>>, vector<32x128xf32>
    %c0_1 = arith.constant 0 : index
    %c0_2 = arith.constant 0 : index
    %1 = vector.load %arg2[%c0_1, %c0_2] : memref<1x128xf32, #tpu.memory_space<vmem>>, vector<1x128xf32>
    %2 = vector.broadcast %1 : vector<1x128xf32> to vector<32x128xf32>
    %3 = arith.mulf %0, %2 : vector<32x128xf32>
    %c0_3 = arith.constant 0 : index
    %c0_4 = arith.constant 0 : index
    %4 = vector.load %arg3[%c0_3, %c0_4] : memref<1x128xf32, #tpu.memory_space<vmem>>, vector<1x128xf32>
    %5 = vector.broadcast %4 : vector<1x128xf32> to vector<32x128xf32>
    %6 = arith.addf %3, %5 : vector<32x128xf32>
    %cst = arith.constant 0.000000e+00 : f32
    %7 = vector.broadcast %cst : f32 to vector<32x128xf32>
    %8 = arith.cmpf oge, %6, %7 : vector<32x128xf32>
    %cst_5 = arith.constant 2.000000e-01 : f32
    %9 = vector.broadcast %cst_5 : f32 to vector<32x128xf32>
    %10 = arith.mulf %9, %6 : vector<32x128xf32>
    %11 = arith.select %8, %6, %10 : vector<32x128xi1>, vector<32x128xf32>
    %12 = arith.truncf %11 : vector<32x128xf32> to vector<32x128xbf16>
    %c0_6 = arith.constant 0 : index
    %c0_7 = arith.constant 0 : index
    %13 = vector.load %arg4[%c0_6, %c0_7] : memref<32x128xbf16, #tpu.memory_space<vmem>>, vector<32x128xbf16>
    tpu.vector_store %arg4[%c0_6, %c0_7], %12 {strides = array<i32>} : memref<32x128xbf16, #tpu.memory_space<vmem>>, vector<32x128xbf16>,
    return
  }
  func.func @transform_0(%arg0: i32) -> (i32, i32) {
    %c0_i32 = arith.constant 0 : i32
    %c0_i32_0 = arith.constant 0 : i32
    return %arg0, %c0_i32 : i32, i32
  }
  func.func @transform_1(%arg0: i32) -> (i32, i32) {
    %c0_i32 = arith.constant 0 : i32
    %c0_i32_0 = arith.constant 0 : i32
    %c0_i32_1 = arith.constant 0 : i32
    return %c0_i32, %c0_i32_0 : i32, i32
  }
  func.func @transform_2(%arg0: i32) -> (i32, i32) {
    %c0_i32 = arith.constant 0 : i32
    %c0_i32_0 = arith.constant 0 : i32
    %c0_i32_1 = arith.constant 0 : i32
    return %c0_i32, %c0_i32_0 : i32, i32
  }
  func.func @transform_3(%arg0: i32) -> (i32, i32) {
    %c0_i32 = arith.constant 0 : i32
    %c0_i32_0 = arith.constant 0 : i32
    return %arg0, %c0_i32 : i32, i32
  }
}

module attributes {stable_mosaic.version = 11 : i64} {
  func.func @_conv_stats_kernel(%arg0: i32, %arg1: memref<32x128xbf16, #tpu.memory_space<vmem>>, %arg2: memref<128x128xbf16, #tpu.memory_space<vmem>>, %arg3: memref<32x128xf32, #tpu.memory_space<vmem>>, %arg4: memref<8x128xf32, #tpu.memory_space<vmem>>) attributes {dimension_semantics = [#tpu.dimension_semantics<parallel>], iteration_bounds = array<i64: 1>, scalar_prefetch = 0 : i64, scratch_operands = 0 : i64, tpu.core_type = #tpu.core_type<tc>, window_params = [{transform_indices = @transform_0, window_bounds = array<i64: 32, 128>}, {pipeline_mode = #tpu.pipeline_mode<synchronous>, transform_indices = @transform_1, window_bounds = array<i64: 128, 128>}, {transform_indices = @transform_2, window_bounds = array<i64: 32, 128>}, {transform_indices = @transform_3, window_bounds = array<i64: 8, 128>}]} {
    %c0 = arith.constant 0 : index
    %c0_0 = arith.constant 0 : index
    %0 = vector.load %arg1[%c0, %c0_0] : memref<32x128xbf16, #tpu.memory_space<vmem>>, vector<32x128xbf16>
    %c0_1 = arith.constant 0 : index
    %c0_2 = arith.constant 0 : index
    %1 = vector.load %arg2[%c0_1, %c0_2] : memref<128x128xbf16, #tpu.memory_space<vmem>>, vector<128x128xbf16>
    %cst = arith.constant dense<0.000000e+00> : vector<32x128xf32>
    %2 = tpu.matmul %0, %1, %cst {dimension_numbers = #tpu.dot_dimension_numbers<[1], [0], [0], [1], [0, 0, 1, 1], [], []>} : vector<32x128xbf16>, vector<128x128xbf16>, vector<32x128xf32> -> vector<32x128xf32>
    %c0_3 = arith.constant 0 : index
    %c0_4 = arith.constant 0 : index
    %3 = vector.load %arg3[%c0_3, %c0_4] : memref<32x128xf32, #tpu.memory_space<vmem>>, vector<32x128xf32>
    tpu.vector_store %arg3[%c0_3, %c0_4], %2 {strides = array<i32>} : memref<32x128xf32, #tpu.memory_space<vmem>>, vector<32x128xf32>,
    %cst_5 = arith.constant dense<0.000000e+00> : vector<128xf32>
    %4 = vector.multi_reduction <add>, %2, %cst_5 [0] : vector<32x128xf32> to vector<128xf32>
    %5 = vector.shape_cast %4 : vector<128xf32> to vector<1x128xf32>
    %6 = arith.mulf %2, %2 : vector<32x128xf32>
    %cst_6 = arith.constant dense<0.000000e+00> : vector<128xf32>
    %7 = vector.multi_reduction <add>, %6, %cst_6 [0] : vector<32x128xf32> to vector<128xf32>
    %8 = vector.shape_cast %7 : vector<128xf32> to vector<1x128xf32>
    %9 = tpu.iota {dimensions = array<i32: 0>} : vector<8x128xi32>
    %c0_i32 = arith.constant 0 : i32
    %10 = vector.broadcast %c0_i32 : i32 to vector<8x128xi32>
    %11 = arith.cmpi eq, %9, %10 : vector<8x128xi32>
    %c1_i32 = arith.constant 1 : i32
    %12 = vector.broadcast %c1_i32 : i32 to vector<8x128xi32>
    %13 = arith.cmpi eq, %9, %12 : vector<8x128xi32>
    %cst_7 = arith.constant 0.000000e+00 : f32
    %14 = vector.shape_cast %8 : vector<1x128xf32> to vector<1x128xf32>
    %15 = vector.broadcast %14 : vector<1x128xf32> to vector<8x128xf32>
    %16 = vector.broadcast %cst_7 : f32 to vector<8x128xf32>
    %17 = arith.select %13, %15, %16 : vector<8x128xi1>, vector<8x128xf32>
    %18 = vector.shape_cast %5 : vector<1x128xf32> to vector<1x128xf32>
    %19 = vector.broadcast %18 : vector<1x128xf32> to vector<8x128xf32>
    %20 = arith.select %11, %19, %17 : vector<8x128xi1>, vector<8x128xf32>
    %c0_8 = arith.constant 0 : index
    %c0_9 = arith.constant 0 : index
    %21 = vector.load %arg4[%c0_8, %c0_9] : memref<8x128xf32, #tpu.memory_space<vmem>>, vector<8x128xf32>
    tpu.vector_store %arg4[%c0_8, %c0_9], %20 {strides = array<i32>} : memref<8x128xf32, #tpu.memory_space<vmem>>, vector<8x128xf32>,
    return
  }
  func.func @transform_0(%arg0: i32) -> (i32, i32) {
    %c0_i32 = arith.constant 0 : i32
    %c0_i32_0 = arith.constant 0 : i32
    return %arg0, %c0_i32 : i32, i32
  }
  func.func @transform_1(%arg0: i32) -> (i32, i32) {
    %c0_i32 = arith.constant 0 : i32
    %c0_i32_0 = arith.constant 0 : i32
    %c0_i32_1 = arith.constant 0 : i32
    return %c0_i32, %c0_i32_0 : i32, i32
  }
  func.func @transform_2(%arg0: i32) -> (i32, i32) {
    %c0_i32 = arith.constant 0 : i32
    %c0_i32_0 = arith.constant 0 : i32
    return %arg0, %c0_i32 : i32, i32
  }
  func.func @transform_3(%arg0: i32) -> (i32, i32) {
    %c0_i32 = arith.constant 0 : i32
    %c0_i32_0 = arith.constant 0 : i32
    return %arg0, %c0_i32 : i32, i32
  }
}

module attributes {stable_mosaic.version = 11 : i64} {
  func.func @_conv_stats_kernel(%arg0: i32, %arg1: memref<32x256xbf16, #tpu.memory_space<vmem>>, %arg2: memref<256x128xbf16, #tpu.memory_space<vmem>>, %arg3: memref<32x128xf32, #tpu.memory_space<vmem>>, %arg4: memref<8x128xf32, #tpu.memory_space<vmem>>) attributes {dimension_semantics = [#tpu.dimension_semantics<parallel>], iteration_bounds = array<i64: 1>, scalar_prefetch = 0 : i64, scratch_operands = 0 : i64, tpu.core_type = #tpu.core_type<tc>, window_params = [{transform_indices = @transform_0, window_bounds = array<i64: 32, 256>}, {pipeline_mode = #tpu.pipeline_mode<synchronous>, transform_indices = @transform_1, window_bounds = array<i64: 256, 128>}, {transform_indices = @transform_2, window_bounds = array<i64: 32, 128>}, {transform_indices = @transform_3, window_bounds = array<i64: 8, 128>}]} {
    %c0 = arith.constant 0 : index
    %c0_0 = arith.constant 0 : index
    %0 = vector.load %arg1[%c0, %c0_0] : memref<32x256xbf16, #tpu.memory_space<vmem>>, vector<32x256xbf16>
    %c0_1 = arith.constant 0 : index
    %c0_2 = arith.constant 0 : index
    %1 = vector.load %arg2[%c0_1, %c0_2] : memref<256x128xbf16, #tpu.memory_space<vmem>>, vector<256x128xbf16>
    %cst = arith.constant dense<0.000000e+00> : vector<32x128xf32>
    %2 = tpu.matmul %0, %1, %cst {dimension_numbers = #tpu.dot_dimension_numbers<[1], [0], [0], [1], [0, 0, 1, 1], [], []>} : vector<32x256xbf16>, vector<256x128xbf16>, vector<32x128xf32> -> vector<32x128xf32>
    %c0_3 = arith.constant 0 : index
    %c0_4 = arith.constant 0 : index
    %3 = vector.load %arg3[%c0_3, %c0_4] : memref<32x128xf32, #tpu.memory_space<vmem>>, vector<32x128xf32>
    tpu.vector_store %arg3[%c0_3, %c0_4], %2 {strides = array<i32>} : memref<32x128xf32, #tpu.memory_space<vmem>>, vector<32x128xf32>,
    %cst_5 = arith.constant dense<0.000000e+00> : vector<128xf32>
    %4 = vector.multi_reduction <add>, %2, %cst_5 [0] : vector<32x128xf32> to vector<128xf32>
    %5 = vector.shape_cast %4 : vector<128xf32> to vector<1x128xf32>
    %6 = arith.mulf %2, %2 : vector<32x128xf32>
    %cst_6 = arith.constant dense<0.000000e+00> : vector<128xf32>
    %7 = vector.multi_reduction <add>, %6, %cst_6 [0] : vector<32x128xf32> to vector<128xf32>
    %8 = vector.shape_cast %7 : vector<128xf32> to vector<1x128xf32>
    %9 = tpu.iota {dimensions = array<i32: 0>} : vector<8x128xi32>
    %c0_i32 = arith.constant 0 : i32
    %10 = vector.broadcast %c0_i32 : i32 to vector<8x128xi32>
    %11 = arith.cmpi eq, %9, %10 : vector<8x128xi32>
    %c1_i32 = arith.constant 1 : i32
    %12 = vector.broadcast %c1_i32 : i32 to vector<8x128xi32>
    %13 = arith.cmpi eq, %9, %12 : vector<8x128xi32>
    %cst_7 = arith.constant 0.000000e+00 : f32
    %14 = vector.shape_cast %8 : vector<1x128xf32> to vector<1x128xf32>
    %15 = vector.broadcast %14 : vector<1x128xf32> to vector<8x128xf32>
    %16 = vector.broadcast %cst_7 : f32 to vector<8x128xf32>
    %17 = arith.select %13, %15, %16 : vector<8x128xi1>, vector<8x128xf32>
    %18 = vector.shape_cast %5 : vector<1x128xf32> to vector<1x128xf32>
    %19 = vector.broadcast %18 : vector<1x128xf32> to vector<8x128xf32>
    %20 = arith.select %11, %19, %17 : vector<8x128xi1>, vector<8x128xf32>
    %c0_8 = arith.constant 0 : index
    %c0_9 = arith.constant 0 : index
    %21 = vector.load %arg4[%c0_8, %c0_9] : memref<8x128xf32, #tpu.memory_space<vmem>>, vector<8x128xf32>
    tpu.vector_store %arg4[%c0_8, %c0_9], %20 {strides = array<i32>} : memref<8x128xf32, #tpu.memory_space<vmem>>, vector<8x128xf32>,
    return
  }
  func.func @transform_0(%arg0: i32) -> (i32, i32) {
    %c0_i32 = arith.constant 0 : i32
    %c0_i32_0 = arith.constant 0 : i32
    return %arg0, %c0_i32 : i32, i32
  }
  func.func @transform_1(%arg0: i32) -> (i32, i32) {
    %c0_i32 = arith.constant 0 : i32
    %c0_i32_0 = arith.constant 0 : i32
    %c0_i32_1 = arith.constant 0 : i32
    return %c0_i32, %c0_i32_0 : i32, i32
  }
  func.func @transform_2(%arg0: i32) -> (i32, i32) {
    %c0_i32 = arith.constant 0 : i32
    %c0_i32_0 = arith.constant 0 : i32
    return %arg0, %c0_i32 : i32, i32
  }
  func.func @transform_3(%arg0: i32) -> (i32, i32) {
    %c0_i32 = arith.constant 0 : i32
    %c0_i32_0 = arith.constant 0 : i32
    return %arg0, %c0_i32 : i32, i32
  }
}

module attributes {stable_mosaic.version = 11 : i64} {
  func.func @_conv_bias_kernel(%arg0: i32, %arg1: memref<16x512xbf16, #tpu.memory_space<vmem>>, %arg2: memref<512x128xbf16, #tpu.memory_space<vmem>>, %arg3: memref<1x128xf32, #tpu.memory_space<vmem>>, %arg4: memref<16x128xf32, #tpu.memory_space<vmem>>) attributes {dimension_semantics = [#tpu.dimension_semantics<parallel>], iteration_bounds = array<i64: 1>, scalar_prefetch = 0 : i64, scratch_operands = 0 : i64, tpu.core_type = #tpu.core_type<tc>, window_params = [{transform_indices = @transform_0, window_bounds = array<i64: 16, 512>}, {pipeline_mode = #tpu.pipeline_mode<synchronous>, transform_indices = @transform_1, window_bounds = array<i64: 512, 128>}, {pipeline_mode = #tpu.pipeline_mode<synchronous>, transform_indices = @transform_2, window_bounds = array<i64: 1, 128>}, {transform_indices = @transform_3, window_bounds = array<i64: 16, 128>}]} {
    %c0 = arith.constant 0 : index
    %c0_0 = arith.constant 0 : index
    %0 = vector.load %arg1[%c0, %c0_0] : memref<16x512xbf16, #tpu.memory_space<vmem>>, vector<16x512xbf16>
    %c0_1 = arith.constant 0 : index
    %c0_2 = arith.constant 0 : index
    %1 = vector.load %arg2[%c0_1, %c0_2] : memref<512x128xbf16, #tpu.memory_space<vmem>>, vector<512x128xbf16>
    %cst = arith.constant dense<0.000000e+00> : vector<16x128xf32>
    %2 = tpu.matmul %0, %1, %cst {dimension_numbers = #tpu.dot_dimension_numbers<[1], [0], [0], [1], [0, 0, 1, 1], [], []>} : vector<16x512xbf16>, vector<512x128xbf16>, vector<16x128xf32> -> vector<16x128xf32>
    %c0_3 = arith.constant 0 : index
    %c0_4 = arith.constant 0 : index
    %3 = vector.load %arg3[%c0_3, %c0_4] : memref<1x128xf32, #tpu.memory_space<vmem>>, vector<1x128xf32>
    %4 = vector.broadcast %3 : vector<1x128xf32> to vector<16x128xf32>
    %5 = arith.addf %2, %4 : vector<16x128xf32>
    %c0_5 = arith.constant 0 : index
    %c0_6 = arith.constant 0 : index
    %6 = vector.load %arg4[%c0_5, %c0_6] : memref<16x128xf32, #tpu.memory_space<vmem>>, vector<16x128xf32>
    tpu.vector_store %arg4[%c0_5, %c0_6], %5 {strides = array<i32>} : memref<16x128xf32, #tpu.memory_space<vmem>>, vector<16x128xf32>,
    return
  }
  func.func @transform_0(%arg0: i32) -> (i32, i32) {
    %c0_i32 = arith.constant 0 : i32
    %c0_i32_0 = arith.constant 0 : i32
    return %arg0, %c0_i32 : i32, i32
  }
  func.func @transform_1(%arg0: i32) -> (i32, i32) {
    %c0_i32 = arith.constant 0 : i32
    %c0_i32_0 = arith.constant 0 : i32
    %c0_i32_1 = arith.constant 0 : i32
    return %c0_i32, %c0_i32_0 : i32, i32
  }
  func.func @transform_2(%arg0: i32) -> (i32, i32) {
    %c0_i32 = arith.constant 0 : i32
    %c0_i32_0 = arith.constant 0 : i32
    %c0_i32_1 = arith.constant 0 : i32
    return %c0_i32, %c0_i32_0 : i32, i32
  }
  func.func @transform_3(%arg0: i32) -> (i32, i32) {
    %c0_i32 = arith.constant 0 : i32
    %c0_i32_0 = arith.constant 0 : i32
    return %arg0, %c0_i32 : i32, i32
  }
}

</mosaic_0001>

<llo_original>
// kernel: patch_discriminator_forward.6
$region0: #{patch_discriminator_forward.6}
  #allocation0 [shape = 'u32[]', space=smem, size = 0x4, offset = 0x4, fixed_abs, tag = 'smem constant byte address 0x4 - core index']
  #allocation1 [shape = 'u32[144,128]{1,0:T(1,128)}', space=vmem, size = 0x12000, scoped, tag = 'internal scratch']
  %s0 = inlined_call_operand.vmem [shape: bf16[128,128], index: 0, kind: input, shape index: {}]
  %s1 = inlined_call_operand.vmem [shape: bf16[128,128], index: 1, kind: input, shape index: {}]
  %s2 = inlined_call_operand.vmem [shape: f32[1,128], index: 2, kind: input, shape index: {}]
  %s3 = inlined_call_operand.vmem [shape: bf16[128,128], index: 3, kind: output, shape index: {}]
  %s4 = sld [smem:[#allocation0]]
  $region22: #{patch_discriminator_forward.6} parent=0
    _
  %s6 = ssub.s32 1, %s4
  %s7 = scalar_select 0, %s6, %s4
  // Predicated region
  $region2: #{patch_discriminator_forward.6} parent=0 // pred_check
    _
  $region3: #{patch_discriminator_forward.6} parent=0 // pred_check_branch
    %9 = sbr.rel (0) target = $region5
  $region4: #{patch_discriminator_forward.6} parent=0 // pred_region
    _
  $region5: #{patch_discriminator_forward.6} parent=0 // pred_fallthru
    _
  // Predicated region
  $region6: #{patch_discriminator_forward.6} parent=0 // pred_check
    _
  $region7: #{patch_discriminator_forward.6} parent=0 // pred_check_branch
    %11 = sbr.rel (0) target = $region9
  $region8: #{patch_discriminator_forward.6} parent=0 // pred_region
    _
  $region9: #{patch_discriminator_forward.6} parent=0 // pred_fallthru
    _
  // Predicated region
  $region10: #{patch_discriminator_forward.6} parent=0 // pred_check
    _
  $region11: #{patch_discriminator_forward.6} parent=0 // pred_check_branch
    %13 = sbr.rel (0) target = $region13
  $region12: #{patch_discriminator_forward.6} parent=0 // pred_region
    _
  $region13: #{patch_discriminator_forward.6} parent=0 // pred_fallthru
    _
  %v15 = vld [vmem:[%s0] sm:$0xf]
  %v16 = vld [vmem:[%s0 + $0x4] sm:$0xf]
  %v17 = vld [vmem:[%s0 + $0x8] sm:$0xf]
  %v18 = vld [vmem:[%s0 + $0xc] sm:$0xf]
  %v19 = vld [vmem:[%s0 + $0x10] sm:$0xf]
  %v20 = vld [vmem:[%s0 + $0x14] sm:$0xf]
  %v21 = vld [vmem:[%s0 + $0x18] sm:$0xf]
  %v22 = vld [vmem:[%s0 + $0x1c] sm:$0xf]
  %v23 = vld [vmem:[%s0 + $0x20] sm:$0xf]
  %v24 = vld [vmem:[%s0 + $0x24] sm:$0xf]
  %v25 = vld [vmem:[%s0 + $0x28] sm:$0xf]
  %v26 = vld [vmem:[%s0 + $0x2c] sm:$0xf]
  %v27 = vld [vmem:[%s0 + $0x30] sm:$0xf]
  %v28 = vld [vmem:[%s0 + $0x34] sm:$0xf]
  %v29 = vld [vmem:[%s0 + $0x38] sm:$0xf]
  %v30 = vld [vmem:[%s0 + $0x3c] sm:$0xf]
  %v31 = vld [vmem:[%s1] sm:$0xf]
  %v32 = vld [vmem:[%s1 + $0x4] sm:$0xf]
  %v33 = vld [vmem:[%s1 + $0x8] sm:$0xf]
  %v34 = vld [vmem:[%s1 + $0xc] sm:$0xf]
  %v35 = vld [vmem:[%s1 + $0x10] sm:$0xf]
  %v36 = vld [vmem:[%s1 + $0x14] sm:$0xf]
  %v37 = vld [vmem:[%s1 + $0x18] sm:$0xf]
  %v38 = vld [vmem:[%s1 + $0x1c] sm:$0xf]
  %v39 = vld [vmem:[%s1 + $0x20] sm:$0xf]
  %v40 = vld [vmem:[%s1 + $0x24] sm:$0xf]
  %v41 = vld [vmem:[%s1 + $0x28] sm:$0xf]
  %v42 = vld [vmem:[%s1 + $0x2c] sm:$0xf]
  %v43 = vld [vmem:[%s1 + $0x30] sm:$0xf]
  %v44 = vld [vmem:[%s1 + $0x34] sm:$0xf]
  %v45 = vld [vmem:[%s1 + $0x38] sm:$0xf]
  %v46 = vld [vmem:[%s1 + $0x3c] sm:$0xf]
  %v47 = vld [vmem:[%s2] sm:$0x1]
  %v49 = vlaneseq
  %v50 = vshrl.u32 %v49, 7
  %v51 = vsub.s32 0, %v50
  %v52 = vrot.slane %v47, %v51
  %v70 = vunpack.c.l.b16 %v15
  %v71 = vunpack.c.l.b16 %v16
  %v72 = vunpack.c.l.b16 %v17
  %v73 = vunpack.c.l.b16 %v18
  %v74 = vunpack.c.l.b16 %v19
  %v75 = vunpack.c.l.b16 %v20
  %v76 = vunpack.c.l.b16 %v21
  %v77 = vunpack.c.l.b16 %v22
  %v78 = vunpack.c.l.b16 %v23
  %v79 = vunpack.c.l.b16 %v24
  %v80 = vunpack.c.l.b16 %v25
  %v81 = vunpack.c.l.b16 %v26
  %v82 = vunpack.c.l.b16 %v27
  %v83 = vunpack.c.l.b16 %v28
  %v84 = vunpack.c.l.b16 %v29
  %v85 = vunpack.c.l.b16 %v30
  %v86 = vpack.c.b16 %v71, %v70
  %v87 = vpack.c.b16 %v73, %v72
  %v88 = vpack.c.b16 %v75, %v74
  %v89 = vpack.c.b16 %v77, %v76
  %v90 = vpack.c.b16 %v79, %v78
  %v91 = vpack.c.b16 %v81, %v80
  %v92 = vpack.c.b16 %v83, %v82
  %v93 = vpack.c.b16 %v85, %v84
  %v118 = vunpack.c.l.b16 %v31
  %v119 = vunpack.c.l.b16 %v32
  %v120 = vunpack.c.l.b16 %v33
  %v121 = vunpack.c.l.b16 %v34
  %v122 = vunpack.c.l.b16 %v35
  %v123 = vunpack.c.l.b16 %v36
  %v124 = vunpack.c.l.b16 %v37
  %v125 = vunpack.c.l.b16 %v38
  %v126 = vunpack.c.l.b16 %v39
  %v127 = vunpack.c.l.b16 %v40
  %v128 = vunpack.c.l.b16 %v41
  %v129 = vunpack.c.l.b16 %v42
  %v130 = vunpack.c.l.b16 %v43
  %v131 = vunpack.c.l.b16 %v44
  %v132 = vunpack.c.l.b16 %v45
  %v133 = vunpack.c.l.b16 %v46
  %v134 = vpack.c.b16 %v119, %v118
  %v135 = vpack.c.b16 %v121, %v120
  %v136 = vpack.c.b16 %v123, %v122
  %v137 = vpack.c.b16 %v125, %v124
  %v138 = vpack.c.b16 %v127, %v126
  %v139 = vpack.c.b16 %v129, %v128
  %v140 = vpack.c.b16 %v131, %v130
  %v141 = vpack.c.b16 %v133, %v132
  %150 = vmatprep.subr.bf16.mxu0 0
  %151 = vmatpush1.bf16.msra.mxu0 %v134
  %152 = vmatprep.subr.bf16.mxu0 0
  %153 = vmatpush1.bf16.msra.mxu0 %v135
  %154 = vmatprep.subr.bf16.mxu0 0
  %155 = vmatpush1.bf16.msra.mxu0 %v136
  %156 = vmatprep.subr.bf16.mxu0 0
  %157 = vmatpush1.bf16.msra.mxu0 %v137
  %158 = vmatprep.subr.bf16.mxu0 0
  %159 = vmatpush1.bf16.msra.mxu0 %v138
  %160 = vmatprep.subr.bf16.mxu0 0
  %161 = vmatpush1.bf16.msra.mxu0 %v139
  %162 = vmatprep.subr.bf16.mxu0 0
  %163 = vmatpush1.bf16.msra.mxu0 %v140
  %164 = vmatprep.subr.bf16.mxu0 0
  %165 = vmatpush1.bf16.msra.mxu0 %v141
  %166 = vmatprep.subr.bf16.mxu0 0
  %167 = vmatpush1.bf16.msra.mxu0 0
  %168 = vmatprep.subr.bf16.mxu0 0
  %169 = vmatpush1.bf16.msra.mxu0 0
  %170 = vmatprep.subr.bf16.mxu0 0
  %171 = vmatpush1.bf16.msra.mxu0 0
  %172 = vmatprep.subr.bf16.mxu0 0
  %173 = vmatpush1.bf16.msra.mxu0 0
  %174 = vmatprep.subr.bf16.mxu0 0
  %175 = vmatpush1.bf16.msra.mxu0 0
  %176 = vmatprep.subr.bf16.mxu0 0
  %177 = vmatpush1.bf16.msra.mxu0 0
  %178 = vmatprep.subr.bf16.mxu0 0
  %179 = vmatpush1.bf16.msra.mxu0 0
  %180 = vmatprep.subr.bf16.mxu0 0
  %181 = vmatpush1.bf16.msra.mxu0 0
  %182 = vmatprep.mubr.bf16.mxu0 0
  %183 = vmatmul.mubr.bf16.gmra.mrb[0].mxu0 %v86
  %v184 = vpop.f32.mrb[0].mxu0
  %v185 = vadd.f32 %v52, %v184
  %v186 = vpop.f32.mrb[0].mxu0
  %v187 = vpop.f32.mrb[0].mxu0
  %v188 = vadd.f32 %v52, %v187
  %v189 = vpop.f32.mrb[0].mxu0
  %190 = vmatprep.mubr.bf16.mxu0 0
  %191 = vmatmul.mubr.bf16.gmra.mrb[0].mxu0 %v87
  %v192 = vpop.f32.mrb[0].mxu0
  %v193 = vadd.f32 %v52, %v192
  %v194 = vpop.f32.mrb[0].mxu0
  %v195 = vpop.f32.mrb[0].mxu0
  %v196 = vadd.f32 %v52, %v195
  %v197 = vpop.f32.mrb[0].mxu0
  %198 = vmatprep.mubr.bf16.mxu0 0
  %199 = vmatmul.mubr.bf16.gmra.mrb[0].mxu0 %v88
  %v200 = vpop.f32.mrb[0].mxu0
  %v201 = vadd.f32 %v52, %v200
  %v202 = vpop.f32.mrb[0].mxu0
  %v203 = vpop.f32.mrb[0].mxu0
  %v204 = vadd.f32 %v52, %v203
  %v205 = vpop.f32.mrb[0].mxu0
  %206 = vmatprep.mubr.bf16.mxu0 0
  %207 = vmatmul.mubr.bf16.gmra.mrb[0].mxu0 %v89
  %v208 = vpop.f32.mrb[0].mxu0
  %v209 = vadd.f32 %v52, %v208
  %v210 = vpop.f32.mrb[0].mxu0
  %v211 = vpop.f32.mrb[0].mxu0
  %v212 = vadd.f32 %v52, %v211
  %v213 = vpop.f32.mrb[0].mxu0
  %214 = vmatprep.mubr.bf16.mxu0 0
  %215 = vmatmul.mubr.bf16.gmra.mrb[0].mxu0 %v90
  %v216 = vpop.f32.mrb[0].mxu0
  %v217 = vadd.f32 %v52, %v216
  %v218 = vpop.f32.mrb[0].mxu0
  %v219 = vpop.f32.mrb[0].mxu0
  %v220 = vadd.f32 %v52, %v219
  %v221 = vpop.f32.mrb[0].mxu0
  %222 = vmatprep.mubr.bf16.mxu0 0
  %223 = vmatmul.mubr.bf16.gmra.mrb[0].mxu0 %v91
  %v224 = vpop.f32.mrb[0].mxu0
  %v225 = vadd.f32 %v52, %v224
  %v226 = vpop.f32.mrb[0].mxu0
  %v227 = vpop.f32.mrb[0].mxu0
  %v228 = vadd.f32 %v52, %v227
  %v229 = vpop.f32.mrb[0].mxu0
  %230 = vmatprep.mubr.bf16.mxu0 0
  %231 = vmatmul.mubr.bf16.gmra.mrb[0].mxu0 %v92
  %v232 = vpop.f32.mrb[0].mxu0
  %v233 = vadd.f32 %v52, %v232
  %v234 = vpop.f32.mrb[0].mxu0
  %v235 = vpop.f32.mrb[0].mxu0
  %v236 = vadd.f32 %v52, %v235
  %v237 = vpop.f32.mrb[0].mxu0
  %238 = vmatprep.mubr.bf16.mxu0 0
  %239 = vmatmul.mubr.bf16.gmra.mrb[0].mxu0 %v93
  %v240 = vpop.f32.mrb[0].mxu0
  %v241 = vadd.f32 %v52, %v240
  %v242 = vpop.f32.mrb[0].mxu0
  %v243 = vpop.f32.mrb[0].mxu0
  %v244 = vadd.f32 %v52, %v243
  %v245 = vpop.f32.mrb[0].mxu0
  %246 = vdwg.mxu0
  %vm247 = vcmp.ge.f32.partialorder %v185, 0.0
  %vm248 = vcmp.ge.f32.partialorder %v188, 0.0
  %vm249 = vcmp.ge.f32.partialorder %v193, 0.0
  %vm250 = vcmp.ge.f32.partialorder %v196, 0.0
  %vm251 = vcmp.ge.f32.partialorder %v201, 0.0
  %vm252 = vcmp.ge.f32.partialorder %v204, 0.0
  %vm253 = vcmp.ge.f32.partialorder %v209, 0.0
  %vm254 = vcmp.ge.f32.partialorder %v212, 0.0
  %vm255 = vcmp.ge.f32.partialorder %v217, 0.0
  %vm256 = vcmp.ge.f32.partialorder %v220, 0.0
  %vm257 = vcmp.ge.f32.partialorder %v225, 0.0
  %vm258 = vcmp.ge.f32.partialorder %v228, 0.0
  %vm259 = vcmp.ge.f32.partialorder %v233, 0.0
  %vm260 = vcmp.ge.f32.partialorder %v236, 0.0
  %vm261 = vcmp.ge.f32.partialorder %v241, 0.0
  %vm262 = vcmp.ge.f32.partialorder %v244, 0.0
  %v263 = vmul.f32 %v185, 0.2
  %v264 = vmul.f32 %v188, 0.2
  %v265 = vmul.f32 %v193, 0.2
  %v266 = vmul.f32 %v196, 0.2
  %v267 = vmul.f32 %v201, 0.2
  %v268 = vmul.f32 %v204, 0.2
  %v269 = vmul.f32 %v209, 0.2
  %v270 = vmul.f32 %v212, 0.2
  %v271 = vmul.f32 %v217, 0.2
  %v272 = vmul.f32 %v220, 0.2
  %v273 = vmul.f32 %v225, 0.2
  %v274 = vmul.f32 %v228, 0.2
  %v275 = vmul.f32 %v233, 0.2
  %v276 = vmul.f32 %v236, 0.2
  %v277 = vmul.f32 %v241, 0.2
  %v278 = vmul.f32 %v244, 0.2
  %v279 = vsel %vm247, %v185, %v263
  %v280 = vsel %vm248, %v188, %v264
  %v281 = vsel %vm249, %v193, %v265
  %v282 = vsel %vm250, %v196, %v266
  %v283 = vsel %vm251, %v201, %v267
  %v284 = vsel %vm252, %v204, %v268
  %v285 = vsel %vm253, %v209, %v269
  %v286 = vsel %vm254, %v212, %v270
  %v287 = vsel %vm255, %v217, %v271
  %v288 = vsel %vm256, %v220, %v272
  %v289 = vsel %vm257, %v225, %v273
  %v290 = vsel %vm258, %v228, %v274
  %v291 = vsel %vm259, %v233, %v275
  %v292 = vsel %vm260, %v236, %v276
  %v293 = vsel %vm261, %v241, %v277
  %v294 = vsel %vm262, %v244, %v278
  %v295 = vpack.c.bf16 %v280, %v279
  %v296 = vpack.c.bf16 %v282, %v281
  %v297 = vpack.c.bf16 %v284, %v283
  %v298 = vpack.c.bf16 %v286, %v285
  %v299 = vpack.c.bf16 %v288, %v287
  %v300 = vpack.c.bf16 %v290, %v289
  %v301 = vpack.c.bf16 %v292, %v291
  %v302 = vpack.c.bf16 %v294, %v293
  %v311 = vunpack.c.l.b16 %v295
  %v312 = vunpack.c.h.b16 %v295
  %v313 = vunpack.c.l.b16 %v296
  %v314 = vunpack.c.h.b16 %v296
  %v315 = vunpack.c.l.b16 %v297
  %v316 = vunpack.c.h.b16 %v297
  %v317 = vunpack.c.l.b16 %v298
  %v318 = vunpack.c.h.b16 %v298
  %v319 = vunpack.c.l.b16 %v299
  %v320 = vunpack.c.h.b16 %v299
  %v321 = vunpack.c.l.b16 %v300
  %v322 = vunpack.c.h.b16 %v300
  %v323 = vunpack.c.l.b16 %v301
  %v324 = vunpack.c.h.b16 %v301
  %v325 = vunpack.c.l.b16 %v302
  %v326 = vunpack.c.h.b16 %v302
  %v327 = vpack.c.b16 %v311, %v311
  %v328 = vpack.c.b16 %v312, %v312
  %v329 = vpack.c.b16 %v313, %v313
  %v330 = vpack.c.b16 %v314, %v314
  %v331 = vpack.c.b16 %v315, %v315
  %v332 = vpack.c.b16 %v316, %v316
  %v333 = vpack.c.b16 %v317, %v317
  %v334 = vpack.c.b16 %v318, %v318
  %v335 = vpack.c.b16 %v319, %v319
  %v336 = vpack.c.b16 %v320, %v320
  %v337 = vpack.c.b16 %v321, %v321
  %v338 = vpack.c.b16 %v322, %v322
  %v339 = vpack.c.b16 %v323, %v323
  %v340 = vpack.c.b16 %v324, %v324
  %v341 = vpack.c.b16 %v325, %v325
  %v342 = vpack.c.b16 %v326, %v326
  %359 = vst [vmem:[%s3] sm:$0xf] %v327
  %360 = vst [vmem:[%s3 + $0x4] sm:$0xf] %v328
  %361 = vst [vmem:[%s3 + $0x8] sm:$0xf] %v329
  %362 = vst [vmem:[%s3 + $0xc] sm:$0xf] %v330
  %363 = vst [vmem:[%s3 + $0x10] sm:$0xf] %v331
  %364 = vst [vmem:[%s3 + $0x14] sm:$0xf] %v332
  %365 = vst [vmem:[%s3 + $0x18] sm:$0xf] %v333
  %366 = vst [vmem:[%s3 + $0x1c] sm:$0xf] %v334
  %367 = vst [vmem:[%s3 + $0x20] sm:$0xf] %v335
  %368 = vst [vmem:[%s3 + $0x24] sm:$0xf] %v336
  %369 = vst [vmem:[%s3 + $0x28] sm:$0xf] %v337
  %370 = vst [vmem:[%s3 + $0x2c] sm:$0xf] %v338
  %371 = vst [vmem:[%s3 + $0x30] sm:$0xf] %v339
  %372 = vst [vmem:[%s3 + $0x34] sm:$0xf] %v340
  %373 = vst [vmem:[%s3 + $0x38] sm:$0xf] %v341
  %374 = vst [vmem:[%s3 + $0x3c] sm:$0xf] %v342
  // Predicated region
  $region14: #{patch_discriminator_forward.6} parent=0 // pred_check
    _
  $region15: #{patch_discriminator_forward.6} parent=0 // pred_check_branch
    %376 = sbr.rel (0) target = $region17
  $region16: #{patch_discriminator_forward.6} parent=0 // pred_region
    _
  $region17: #{patch_discriminator_forward.6} parent=0 // pred_fallthru
    _
  // Predicated region
  $region18: #{patch_discriminator_forward.6} parent=0 // pred_check
    _
  $region19: #{patch_discriminator_forward.6} parent=0 // pred_check_branch
    %378 = sbr.rel (0) target = $region21
  $region20: #{patch_discriminator_forward.6} parent=0 // pred_region
    _
  $region21: #{patch_discriminator_forward.6} parent=0 // pred_fallthru
    _

// kernel: patch_discriminator_forward.8
$region0: #{patch_discriminator_forward.8}
  #allocation0 [shape = 'u32[]', space=smem, size = 0x4, offset = 0x4, fixed_abs, tag = 'smem constant byte address 0x4 - core index']
  #allocation1 [shape = 'u32[144,128]{1,0:T(1,128)}', space=vmem, size = 0x12000, scoped, tag = 'internal scratch']
  %s0 = inlined_call_operand.vmem [shape: f32[32,128], index: 0, kind: input, shape index: {}]
  %s1 = inlined_call_operand.vmem [shape: f32[1,128], index: 1, kind: input, shape index: {}]
  %s2 = inlined_call_operand.vmem [shape: f32[1,128], index: 2, kind: input, shape index: {}]
  %s3 = inlined_call_operand.vmem [shape: bf16[32,128], index: 3, kind: output, shape index: {}]
  %s4 = sld [smem:[#allocation0]]
  $region22: #{patch_discriminator_forward.8} parent=0
    _
  %s6 = ssub.s32 1, %s4
  %s7 = scalar_select 0, %s6, %s4
  // Predicated region
  $region2: #{patch_discriminator_forward.8} parent=0 // pred_check
    _
  $region3: #{patch_discriminator_forward.8} parent=0 // pred_check_branch
    %9 = sbr.rel (0) target = $region5
  $region4: #{patch_discriminator_forward.8} parent=0 // pred_region
    _
  $region5: #{patch_discriminator_forward.8} parent=0 // pred_fallthru
    _
  // Predicated region
  $region6: #{patch_discriminator_forward.8} parent=0 // pred_check
    _
  $region7: #{patch_discriminator_forward.8} parent=0 // pred_check_branch
    %11 = sbr.rel (0) target = $region9
  $region8: #{patch_discriminator_forward.8} parent=0 // pred_region
    _
  $region9: #{patch_discriminator_forward.8} parent=0 // pred_fallthru
    _
  // Predicated region
  $region10: #{patch_discriminator_forward.8} parent=0 // pred_check
    _
  $region11: #{patch_discriminator_forward.8} parent=0 // pred_check_branch
    %13 = sbr.rel (0) target = $region13
  $region12: #{patch_discriminator_forward.8} parent=0 // pred_region
    _
  $region13: #{patch_discriminator_forward.8} parent=0 // pred_fallthru
    _
  %v14 = vld [vmem:[%s0] sm:$0xff]
  %v15 = vld [vmem:[%s0 + $0x8] sm:$0xff]
  %v16 = vld [vmem:[%s0 + $0x10] sm:$0xff]
  %v17 = vld [vmem:[%s0 + $0x18] sm:$0xff]
  %v18 = vld [vmem:[%s1] sm:$0x1]
  %v20 = vlaneseq
  %v21 = vshrl.u32 %v20, 7
  %v22 = vsub.s32 0, %v21
  %v23 = vrot.slane %v18, %v22
  %v25 = vmul.f32 %v14, %v23
  %v26 = vmul.f32 %v15, %v23
  %v27 = vmul.f32 %v16, %v23
  %v28 = vmul.f32 %v17, %v23
  %v29 = vld [vmem:[%s2] sm:$0x1]
  %v31 = vlaneseq
  %v32 = vshrl.u32 %v31, 7
  %v33 = vsub.s32 0, %v32
  %v34 = vrot.slane %v29, %v33
  %v36 = vadd.f32 %v25, %v34
  %v37 = vadd.f32 %v26, %v34
  %v38 = vadd.f32 %v27, %v34
  %v39 = vadd.f32 %v28, %v34
  %vm40 = vcmp.ge.f32.partialorder %v36, 0.0
  %vm41 = vcmp.ge.f32.partialorder %v37, 0.0
  %vm42 = vcmp.ge.f32.partialorder %v38, 0.0
  %vm43 = vcmp.ge.f32.partialorder %v39, 0.0
  %v44 = vmul.f32 %v36, 0.2
  %v45 = vmul.f32 %v37, 0.2
  %v46 = vmul.f32 %v38, 0.2
  %v47 = vmul.f32 %v39, 0.2
  %v48 = vsel %vm40, %v36, %v44
  %v49 = vsel %vm41, %v37, %v45
  %v50 = vsel %vm42, %v38, %v46
  %v51 = vsel %vm43, %v39, %v47
  %v52 = vpack.c.bf16 %v49, %v48
  %v53 = vpack.c.bf16 %v51, %v50
  %v56 = vunpack.c.l.b16 %v52
  %v57 = vunpack.c.h.b16 %v52
  %v58 = vunpack.c.l.b16 %v53
  %v59 = vunpack.c.h.b16 %v53
  %v60 = vpack.c.b16 %v56, %v56
  %v61 = vpack.c.b16 %v57, %v57
  %v62 = vpack.c.b16 %v58, %v58
  %v63 = vpack.c.b16 %v59, %v59
  %68 = vst [vmem:[%s3] sm:$0xf] %v60
  %69 = vst [vmem:[%s3 + $0x4] sm:$0xf] %v61
  %70 = vst [vmem:[%s3 + $0x8] sm:$0xf] %v62
  %71 = vst [vmem:[%s3 + $0xc] sm:$0xf] %v63
  // Predicated region
  $region14: #{patch_discriminator_forward.8} parent=0 // pred_check
    _
  $region15: #{patch_discriminator_forward.8} parent=0 // pred_check_branch
    %73 = sbr.rel (0) target = $region17
  $region16: #{patch_discriminator_forward.8} parent=0 // pred_region
    _
  $region17: #{patch_discriminator_forward.8} parent=0 // pred_fallthru
    _
  // Predicated region
  $region18: #{patch_discriminator_forward.8} parent=0 // pred_check
    _
  $region19: #{patch_discriminator_forward.8} parent=0 // pred_check_branch
    %75 = sbr.rel (0) target = $region21
  $region20: #{patch_discriminator_forward.8} parent=0 // pred_region
    _
  $region21: #{patch_discriminator_forward.8} parent=0 // pred_fallthru
    _

// kernel: patch_discriminator_forward.7
$region0: #{patch_discriminator_forward.7}
  #allocation0 [shape = 'u32[]', space=smem, size = 0x4, offset = 0x4, fixed_abs, tag = 'smem constant byte address 0x4 - core index']
  #allocation1 [shape = 'u32[144,128]{1,0:T(1,128)}', space=vmem, size = 0x12000, scoped, tag = 'internal scratch']
  %s0 = inlined_call_operand.vmem [shape: bf16[32,128], index: 0, kind: input, shape index: {}]
  %s1 = inlined_call_operand.vmem [shape: bf16[128,128], index: 1, kind: input, shape index: {}]
  %s2 = inlined_call_operand.vmem [shape: f32[32,128], index: 2, kind: output, shape index: {0}]
  %s3 = inlined_call_operand.vmem [shape: f32[8,128], index: 3, kind: output, shape index: {1}]
  %4 = xla_tuple %s2, %s3
  %s5 = sld [smem:[#allocation0]]
  $region26: #{patch_discriminator_forward.7} parent=0
    _
  %s7 = ssub.s32 1, %s5
  %s8 = scalar_select 0, %s7, %s5
  // Predicated region
  $region2: #{patch_discriminator_forward.7} parent=0 // pred_check
    _
  $region3: #{patch_discriminator_forward.7} parent=0 // pred_check_branch
    %10 = sbr.rel (0) target = $region5
  $region4: #{patch_discriminator_forward.7} parent=0 // pred_region
    _
  $region5: #{patch_discriminator_forward.7} parent=0 // pred_fallthru
    _
  // Predicated region
  $region6: #{patch_discriminator_forward.7} parent=0 // pred_check
    _
  $region7: #{patch_discriminator_forward.7} parent=0 // pred_check_branch
    %12 = sbr.rel (0) target = $region9
  $region8: #{patch_discriminator_forward.7} parent=0 // pred_region
    _
  $region9: #{patch_discriminator_forward.7} parent=0 // pred_fallthru
    _
  %v14 = vld [vmem:[%s0] sm:$0xf]
  %v15 = vld [vmem:[%s0 + $0x4] sm:$0xf]
  %v16 = vld [vmem:[%s0 + $0x8] sm:$0xf]
  %v17 = vld [vmem:[%s0 + $0xc] sm:$0xf]
  %v18 = vld [vmem:[%s1] sm:$0xf]
  %v19 = vld [vmem:[%s1 + $0x4] sm:$0xf]
  %v20 = vld [vmem:[%s1 + $0x8] sm:$0xf]
  %v21 = vld [vmem:[%s1 + $0xc] sm:$0xf]
  %v22 = vld [vmem:[%s1 + $0x10] sm:$0xf]
  %v23 = vld [vmem:[%s1 + $0x14] sm:$0xf]
  %v24 = vld [vmem:[%s1 + $0x18] sm:$0xf]
  %v25 = vld [vmem:[%s1 + $0x1c] sm:$0xf]
  %v26 = vld [vmem:[%s1 + $0x20] sm:$0xf]
  %v27 = vld [vmem:[%s1 + $0x24] sm:$0xf]
  %v28 = vld [vmem:[%s1 + $0x28] sm:$0xf]
  %v29 = vld [vmem:[%s1 + $0x2c] sm:$0xf]
  %v30 = vld [vmem:[%s1 + $0x30] sm:$0xf]
  %v31 = vld [vmem:[%s1 + $0x34] sm:$0xf]
  %v32 = vld [vmem:[%s1 + $0x38] sm:$0xf]
  %v33 = vld [vmem:[%s1 + $0x3c] sm:$0xf]
  %v38 = vunpack.c.l.b16 %v14
  %v39 = vunpack.c.l.b16 %v15
  %v40 = vunpack.c.l.b16 %v16
  %v41 = vunpack.c.l.b16 %v17
  %v42 = vpack.c.b16 %v39, %v38
  %v43 = vpack.c.b16 %v41, %v40
  %v62 = vunpack.c.l.b16 %v18
  %v63 = vunpack.c.l.b16 %v19
  %v64 = vunpack.c.l.b16 %v20
  %v65 = vunpack.c.l.b16 %v21
  %v66 = vunpack.c.l.b16 %v22
  %v67 = vunpack.c.l.b16 %v23
  %v68 = vunpack.c.l.b16 %v24
  %v69 = vunpack.c.l.b16 %v25
  %v70 = vunpack.c.l.b16 %v26
  %v71 = vunpack.c.l.b16 %v27
  %v72 = vunpack.c.l.b16 %v28
  %v73 = vunpack.c.l.b16 %v29
  %v74 = vunpack.c.l.b16 %v30
  %v75 = vunpack.c.l.b16 %v31
  %v76 = vunpack.c.l.b16 %v32
  %v77 = vunpack.c.l.b16 %v33
  %v78 = vpack.c.b16 %v63, %v62
  %v79 = vpack.c.b16 %v65, %v64
  %v80 = vpack.c.b16 %v67, %v66
  %v81 = vpack.c.b16 %v69, %v68
  %v82 = vpack.c.b16 %v71, %v70
  %v83 = vpack.c.b16 %v73, %v72
  %v84 = vpack.c.b16 %v75, %v74
  %v85 = vpack.c.b16 %v77, %v76
  %94 = vmatprep.subr.bf16.mxu0 0
  %95 = vmatpush1.bf16.msra.mxu0 %v78
  %96 = vmatprep.subr.bf16.mxu0 0
  %97 = vmatpush1.bf16.msra.mxu0 %v79
  %98 = vmatprep.subr.bf16.mxu0 0
  %99 = vmatpush1.bf16.msra.mxu0 %v80
  %100 = vmatprep.subr.bf16.mxu0 0
  %101 = vmatpush1.bf16.msra.mxu0 %v81
  %102 = vmatprep.subr.bf16.mxu0 0
  %103 = vmatpush1.bf16.msra.mxu0 %v82
  %104 = vmatprep.subr.bf16.mxu0 0
  %105 = vmatpush1.bf16.msra.mxu0 %v83
  %106 = vmatprep.subr.bf16.mxu0 0
  %107 = vmatpush1.bf16.msra.mxu0 %v84
  %108 = vmatprep.subr.bf16.mxu0 0
  %109 = vmatpush1.bf16.msra.mxu0 %v85
  %110 = vmatprep.subr.bf16.mxu0 0
  %111 = vmatpush1.bf16.msra.mxu0 0
  %112 = vmatprep.subr.bf16.mxu0 0
  %113 = vmatpush1.bf16.msra.mxu0 0
  %114 = vmatprep.subr.bf16.mxu0 0
  %115 = vmatpush1.bf16.msra.mxu0 0
  %116 = vmatprep.subr.bf16.mxu0 0
  %117 = vmatpush1.bf16.msra.mxu0 0
  %118 = vmatprep.subr.bf16.mxu0 0
  %119 = vmatpush1.bf16.msra.mxu0 0
  %120 = vmatprep.subr.bf16.mxu0 0
  %121 = vmatpush1.bf16.msra.mxu0 0
  %122 = vmatprep.subr.bf16.mxu0 0
  %123 = vmatpush1.bf16.msra.mxu0 0
  %124 = vmatprep.subr.bf16.mxu0 0
  %125 = vmatpush1.bf16.msra.mxu0 0
  %126 = vmatprep.mubr.bf16.mxu0 0
  %127 = vmatmul.mubr.bf16.gmra.mrb[0].mxu0 %v42
  %v128 = vpop.f32.mrb[0].mxu0
  %v129 = vadd.f32 0.0, %v128
  %v130 = vpop.f32.mrb[0].mxu0
  %v131 = vpop.f32.mrb[0].mxu0
  %v132 = vadd.f32 0.0, %v131
  %v133 = vpop.f32.mrb[0].mxu0
  %134 = vmatprep.mubr.bf16.mxu0 0
  %135 = vmatmul.mubr.bf16.gmra.mrb[0].mxu0 %v43
  %v136 = vpop.f32.mrb[0].mxu0
  %v137 = vadd.f32 0.0, %v136
  %v138 = vpop.f32.mrb[0].mxu0
  %v139 = vpop.f32.mrb[0].mxu0
  %v140 = vadd.f32 0.0, %v139
  %v141 = vpop.f32.mrb[0].mxu0
  %142 = vdwg.mxu0
  %143 = vst [vmem:[%s2] sm:$0xff] %v129
  %144 = vst [vmem:[%s2 + $0x8] sm:$0xff] %v132
  %145 = vst [vmem:[%s2 + $0x10] sm:$0xff] %v137
  %146 = vst [vmem:[%s2 + $0x18] sm:$0xff] %v140
  %v147 = vadd.f32 %v129, %v132
  %v148 = vadd.f32 %v147, %v137
  %v149 = vadd.f32 %v148, %v140
  %v150 = vrot.slane %v149, 4
  %v151 = vadd.f32 %v149, %v150
  %v152 = vrot.slane %v151, 2
  %v153 = vadd.f32 %v151, %v152
  %v154 = vrot.slane %v153, 1
  %v155 = vadd.f32 %v153, %v154
  %v156 = vmul.f32 %v129, %v129
  %v157 = vmul.f32 %v132, %v132
  %v158 = vmul.f32 %v137, %v137
  %v159 = vmul.f32 %v140, %v140
  %v160 = vadd.f32 %v156, %v157
  %v161 = vadd.f32 %v160, %v158
  %v162 = vadd.f32 %v161, %v159
  %v163 = vrot.slane %v162, 4
  %v164 = vadd.f32 %v162, %v163
  %v165 = vrot.slane %v164, 2
  %v166 = vadd.f32 %v164, %v165
  %v167 = vrot.slane %v166, 1
  %v168 = vadd.f32 %v166, %v167
  %v169 = vlaneseq
  %v170 = vshrl.u32 %v169, 7
  %vm171 = vcmp.eq.s32.totalorder %v170, 0
  %vm172 = vcmp.eq.s32.totalorder %v170, 1
  %v173 = vsel %vm172, %v168, 0.0
  %v174 = vsel %vm171, %v155, %v173
  %175 = vst [vmem:[%s3] sm:$0xff] %v174
  // Predicated region
  $region10: #{patch_discriminator_forward.7} parent=0 // pred_check
    _
  $region11: #{patch_discriminator_forward.7} parent=0 // pred_check_branch
    %177 = sbr.rel (0) target = $region13
  $region12: #{patch_discriminator_forward.7} parent=0 // pred_region
    _
  $region13: #{patch_discriminator_forward.7} parent=0 // pred_fallthru
    _
  // Predicated region
  $region14: #{patch_discriminator_forward.7} parent=0 // pred_check
    _
  $region15: #{patch_discriminator_forward.7} parent=0 // pred_check_branch
    %179 = sbr.rel (0) target = $region17
  $region16: #{patch_discriminator_forward.7} parent=0 // pred_region
    _
  $region17: #{patch_discriminator_forward.7} parent=0 // pred_fallthru
    _
  // Predicated region
  $region18: #{patch_discriminator_forward.7} parent=0 // pred_check
    _
  $region19: #{patch_discriminator_forward.7} parent=0 // pred_check_branch
    %181 = sbr.rel (0) target = $region21
  $region20: #{patch_discriminator_forward.7} parent=0 // pred_region
    _
  $region21: #{patch_discriminator_forward.7} parent=0 // pred_fallthru
    _
  // Predicated region
  $region22: #{patch_discriminator_forward.7} parent=0 // pred_check
    _
  $region23: #{patch_discriminator_forward.7} parent=0 // pred_check_branch
    %183 = sbr.rel (0) target = $region25
  $region24: #{patch_discriminator_forward.7} parent=0 // pred_region
    _
  $region25: #{patch_discriminator_forward.7} parent=0 // pred_fallthru
    _

// kernel: patch_discriminator_forward.9
$region0: #{patch_discriminator_forward.9}
  #allocation0 [shape = 'u32[]', space=smem, size = 0x4, offset = 0x4, fixed_abs, tag = 'smem constant byte address 0x4 - core index']
  #allocation1 [shape = 'u32[144,128]{1,0:T(1,128)}', space=vmem, size = 0x12000, scoped, tag = 'internal scratch']
  %s0 = inlined_call_operand.vmem [shape: bf16[32,256], index: 0, kind: input, shape index: {}]
  %s1 = inlined_call_operand.vmem [shape: bf16[256,128], index: 1, kind: input, shape index: {}]
  %s2 = inlined_call_operand.vmem [shape: f32[32,128], index: 2, kind: output, shape index: {0}]
  %s3 = inlined_call_operand.vmem [shape: f32[8,128], index: 3, kind: output, shape index: {1}]
  %4 = xla_tuple %s2, %s3
  %s5 = sld [smem:[#allocation0]]
  $region26: #{patch_discriminator_forward.9} parent=0
    _
  %s7 = ssub.s32 1, %s5
  %s8 = scalar_select 0, %s7, %s5
  // Predicated region
  $region2: #{patch_discriminator_forward.9} parent=0 // pred_check
    _
  $region3: #{patch_discriminator_forward.9} parent=0 // pred_check_branch
    %10 = sbr.rel (0) target = $region5
  $region4: #{patch_discriminator_forward.9} parent=0 // pred_region
    _
  $region5: #{patch_discriminator_forward.9} parent=0 // pred_fallthru
    _
  // Predicated region
  $region6: #{patch_discriminator_forward.9} parent=0 // pred_check
    _
  $region7: #{patch_discriminator_forward.9} parent=0 // pred_check_branch
    %12 = sbr.rel (0) target = $region9
  $region8: #{patch_discriminator_forward.9} parent=0 // pred_region
    _
  $region9: #{patch_discriminator_forward.9} parent=0 // pred_fallthru
    _
  %v14 = vld [vmem:[%s0] sm:$0xff]
  %v15 = vld [vmem:[%s0 + $0x8] sm:$0xff]
  %v16 = vld [vmem:[%s0 + $0x10] sm:$0xff]
  %v17 = vld [vmem:[%s0 + $0x18] sm:$0xff]
  %v18 = vld [vmem:[%s1] sm:$0xf]
  %v19 = vld [vmem:[%s1 + $0x4] sm:$0xf]
  %v20 = vld [vmem:[%s1 + $0x8] sm:$0xf]
  %v21 = vld [vmem:[%s1 + $0xc] sm:$0xf]
  %v22 = vld [vmem:[%s1 + $0x10] sm:$0xf]
  %v23 = vld [vmem:[%s1 + $0x14] sm:$0xf]
  %v24 = vld [vmem:[%s1 + $0x18] sm:$0xf]
  %v25 = vld [vmem:[%s1 + $0x1c] sm:$0xf]
  %v26 = vld [vmem:[%s1 + $0x20] sm:$0xf]
  %v27 = vld [vmem:[%s1 + $0x24] sm:$0xf]
  %v28 = vld [vmem:[%s1 + $0x28] sm:$0xf]
  %v29 = vld [vmem:[%s1 + $0x2c] sm:$0xf]
  %v30 = vld [vmem:[%s1 + $0x30] sm:$0xf]
  %v31 = vld [vmem:[%s1 + $0x34] sm:$0xf]
  %v32 = vld [vmem:[%s1 + $0x38] sm:$0xf]
  %v33 = vld [vmem:[%s1 + $0x3c] sm:$0xf]
  %v34 = vld [vmem:[%s1 + $0x40] sm:$0xf]
  %v35 = vld [vmem:[%s1 + $0x44] sm:$0xf]
  %v36 = vld [vmem:[%s1 + $0x48] sm:$0xf]
  %v37 = vld [vmem:[%s1 + $0x4c] sm:$0xf]
  %v38 = vld [vmem:[%s1 + $0x50] sm:$0xf]
  %v39 = vld [vmem:[%s1 + $0x54] sm:$0xf]
  %v40 = vld [vmem:[%s1 + $0x58] sm:$0xf]
  %v41 = vld [vmem:[%s1 + $0x5c] sm:$0xf]
  %v42 = vld [vmem:[%s1 + $0x60] sm:$0xf]
  %v43 = vld [vmem:[%s1 + $0x64] sm:$0xf]
  %v44 = vld [vmem:[%s1 + $0x68] sm:$0xf]
  %v45 = vld [vmem:[%s1 + $0x6c] sm:$0xf]
  %v46 = vld [vmem:[%s1 + $0x70] sm:$0xf]
  %v47 = vld [vmem:[%s1 + $0x74] sm:$0xf]
  %v48 = vld [vmem:[%s1 + $0x78] sm:$0xf]
  %v49 = vld [vmem:[%s1 + $0x7c] sm:$0xf]
  %v54 = vunpack.c.l.b16 %v14
  %v55 = vunpack.c.h.b16 %v14
  %v56 = vunpack.c.l.b16 %v15
  %v57 = vunpack.c.h.b16 %v15
  %v58 = vunpack.c.l.b16 %v16
  %v59 = vunpack.c.h.b16 %v16
  %v60 = vunpack.c.l.b16 %v17
  %v61 = vunpack.c.h.b16 %v17
  %v62 = vpack.c.b16 %v56, %v54
  %v63 = vpack.c.b16 %v57, %v55
  %v64 = vpack.c.b16 %v60, %v58
  %v65 = vpack.c.b16 %v61, %v59
  %v102 = vunpack.c.l.b16 %v18
  %v103 = vunpack.c.l.b16 %v19
  %v104 = vunpack.c.l.b16 %v20
  %v105 = vunpack.c.l.b16 %v21
  %v106 = vunpack.c.l.b16 %v22
  %v107 = vunpack.c.l.b16 %v23
  %v108 = vunpack.c.l.b16 %v24
  %v109 = vunpack.c.l.b16 %v25
  %v110 = vunpack.c.l.b16 %v26
  %v111 = vunpack.c.l.b16 %v27
  %v112 = vunpack.c.l.b16 %v28
  %v113 = vunpack.c.l.b16 %v29
  %v114 = vunpack.c.l.b16 %v30
  %v115 = vunpack.c.l.b16 %v31
  %v116 = vunpack.c.l.b16 %v32
  %v117 = vunpack.c.l.b16 %v33
  %v118 = vunpack.c.l.b16 %v34
  %v119 = vunpack.c.l.b16 %v35
  %v120 = vunpack.c.l.b16 %v36
  %v121 = vunpack.c.l.b16 %v37
  %v122 = vunpack.c.l.b16 %v38
  %v123 = vunpack.c.l.b16 %v39
  %v124 = vunpack.c.l.b16 %v40
  %v125 = vunpack.c.l.b16 %v41
  %v126 = vunpack.c.l.b16 %v42
  %v127 = vunpack.c.l.b16 %v43
  %v128 = vunpack.c.l.b16 %v44
  %v129 = vunpack.c.l.b16 %v45
  %v130 = vunpack.c.l.b16 %v46
  %v131 = vunpack.c.l.b16 %v47
  %v132 = vunpack.c.l.b16 %v48
  %v133 = vunpack.c.l.b16 %v49
  %v134 = vpack.c.b16 %v103, %v102
  %v135 = vpack.c.b16 %v105, %v104
  %v136 = vpack.c.b16 %v107, %v106
  %v137 = vpack.c.b16 %v109, %v108
  %v138 = vpack.c.b16 %v111, %v110
  %v139 = vpack.c.b16 %v113, %v112
  %v140 = vpack.c.b16 %v115, %v114
  %v141 = vpack.c.b16 %v117, %v116
  %v142 = vpack.c.b16 %v119, %v118
  %v143 = vpack.c.b16 %v121, %v120
  %v144 = vpack.c.b16 %v123, %v122
  %v145 = vpack.c.b16 %v125, %v124
  %v146 = vpack.c.b16 %v127, %v126
  %v147 = vpack.c.b16 %v129, %v128
  %v148 = vpack.c.b16 %v131, %v130
  %v149 = vpack.c.b16 %v133, %v132
  %166 = vmatprep.subr.bf16.mxu0 0
  %167 = vmatpush1.bf16.msra.mxu0 %v134
  %168 = vmatprep.subr.bf16.mxu0 0
  %169 = vmatpush1.bf16.msra.mxu0 %v135
  %170 = vmatprep.subr.bf16.mxu0 0
  %171 = vmatpush1.bf16.msra.mxu0 %v136
  %172 = vmatprep.subr.bf16.mxu0 0
  %173 = vmatpush1.bf16.msra.mxu0 %v137
  %174 = vmatprep.subr.bf16.mxu0 0
  %175 = vmatpush1.bf16.msra.mxu0 %v138
  %176 = vmatprep.subr.bf16.mxu0 0
  %177 = vmatpush1.bf16.msra.mxu0 %v139
  %178 = vmatprep.subr.bf16.mxu0 0
  %179 = vmatpush1.bf16.msra.mxu0 %v140
  %180 = vmatprep.subr.bf16.mxu0 0
  %181 = vmatpush1.bf16.msra.mxu0 %v141
  %182 = vmatprep.subr.bf16.mxu0 0
  %183 = vmatpush1.bf16.msra.mxu0 %v142
  %184 = vmatprep.subr.bf16.mxu0 0
  %185 = vmatpush1.bf16.msra.mxu0 %v143
  %186 = vmatprep.subr.bf16.mxu0 0
  %187 = vmatpush1.bf16.msra.mxu0 %v144
  %188 = vmatprep.subr.bf16.mxu0 0
  %189 = vmatpush1.bf16.msra.mxu0 %v145
  %190 = vmatprep.subr.bf16.mxu0 0
  %191 = vmatpush1.bf16.msra.mxu0 %v146
  %192 = vmatprep.subr.bf16.mxu0 0
  %193 = vmatpush1.bf16.msra.mxu0 %v147
  %194 = vmatprep.subr.bf16.mxu0 0
  %195 = vmatpush1.bf16.msra.mxu0 %v148
  %196 = vmatprep.subr.bf16.mxu0 0
  %197 = vmatpush1.bf16.msra.mxu0 %v149
  %198 = vmatprep.mubr.bf16.mxu0 %v63
  %199 = vmatmul.mubr.bf16.gmra.mrb[0].mxu0 %v62
  %v200 = vpop.f32.mrb[0].mxu0
  %v201 = vadd.f32 0.0, %v200
  %v202 = vpop.f32.mrb[0].mxu0
  %v203 = vpop.f32.mrb[0].mxu0
  %v204 = vadd.f32 0.0, %v203
  %v205 = vpop.f32.mrb[0].mxu0
  %206 = vmatprep.mubr.bf16.mxu0 %v65
  %207 = vmatmul.mubr.bf16.gmra.mrb[0].mxu0 %v64
  %v208 = vpop.f32.mrb[0].mxu0
  %v209 = vadd.f32 0.0, %v208
  %v210 = vpop.f32.mrb[0].mxu0
  %v211 = vpop.f32.mrb[0].mxu0
  %v212 = vadd.f32 0.0, %v211
  %v213 = vpop.f32.mrb[0].mxu0
  %214 = vdwg.mxu0
  %215 = vst [vmem:[%s2] sm:$0xff] %v201
  %216 = vst [vmem:[%s2 + $0x8] sm:$0xff] %v204
  %217 = vst [vmem:[%s2 + $0x10] sm:$0xff] %v209
  %218 = vst [vmem:[%s2 + $0x18] sm:$0xff] %v212
  %v219 = vadd.f32 %v201, %v204
  %v220 = vadd.f32 %v219, %v209
  %v221 = vadd.f32 %v220, %v212
  %v222 = vrot.slane %v221, 4
  %v223 = vadd.f32 %v221, %v222
  %v224 = vrot.slane %v223, 2
  %v225 = vadd.f32 %v223, %v224
  %v226 = vrot.slane %v225, 1
  %v227 = vadd.f32 %v225, %v226
  %v228 = vmul.f32 %v201, %v201
  %v229 = vmul.f32 %v204, %v204
  %v230 = vmul.f32 %v209, %v209
  %v231 = vmul.f32 %v212, %v212
  %v232 = vadd.f32 %v228, %v229
  %v233 = vadd.f32 %v232, %v230
  %v234 = vadd.f32 %v233, %v231
  %v235 = vrot.slane %v234, 4
  %v236 = vadd.f32 %v234, %v235
  %v237 = vrot.slane %v236, 2
  %v238 = vadd.f32 %v236, %v237
  %v239 = vrot.slane %v238, 1
  %v240 = vadd.f32 %v238, %v239
  %v241 = vlaneseq
  %v242 = vshrl.u32 %v241, 7
  %vm243 = vcmp.eq.s32.totalorder %v242, 0
  %vm244 = vcmp.eq.s32.totalorder %v242, 1
  %v245 = vsel %vm244, %v240, 0.0
  %v246 = vsel %vm243, %v227, %v245
  %247 = vst [vmem:[%s3] sm:$0xff] %v246
  // Predicated region
  $region10: #{patch_discriminator_forward.9} parent=0 // pred_check
    _
  $region11: #{patch_discriminator_forward.9} parent=0 // pred_check_branch
    %249 = sbr.rel (0) target = $region13
  $region12: #{patch_discriminator_forward.9} parent=0 // pred_region
    _
  $region13: #{patch_discriminator_forward.9} parent=0 // pred_fallthru
    _
  // Predicated region
  $region14: #{patch_discriminator_forward.9} parent=0 // pred_check
    _
  $region15: #{patch_discriminator_forward.9} parent=0 // pred_check_branch
    %251 = sbr.rel (0) target = $region17
  $region16: #{patch_discriminator_forward.9} parent=0 // pred_region
    _
  $region17: #{patch_discriminator_forward.9} parent=0 // pred_fallthru
    _
  // Predicated region
  $region18: #{patch_discriminator_forward.9} parent=0 // pred_check
    _
  $region19: #{patch_discriminator_forward.9} parent=0 // pred_check_branch
    %253 = sbr.rel (0) target = $region21
  $region20: #{patch_discriminator_forward.9} parent=0 // pred_region
    _
  $region21: #{patch_discriminator_forward.9} parent=0 // pred_fallthru
    _
  // Predicated region
  $region22: #{patch_discriminator_forward.9} parent=0 // pred_check
    _
  $region23: #{patch_discriminator_forward.9} parent=0 // pred_check_branch
    %255 = sbr.rel (0) target = $region25
  $region24: #{patch_discriminator_forward.9} parent=0 // pred_region
    _
  $region25: #{patch_discriminator_forward.9} parent=0 // pred_fallthru
    _

// kernel: patch_discriminator_forward.11
$region0: #{patch_discriminator_forward.11}
  #allocation0 [shape = 'u32[]', space=smem, size = 0x4, offset = 0x4, fixed_abs, tag = 'smem constant byte address 0x4 - core index']
  #allocation1 [shape = 'u32[144,128]{1,0:T(1,128)}', space=vmem, size = 0x12000, scoped, tag = 'internal scratch']
  %s0 = inlined_call_operand.vmem [shape: bf16[16,512], index: 0, kind: input, shape index: {}]
  %s1 = inlined_call_operand.vmem [shape: bf16[512,128], index: 1, kind: input, shape index: {}]
  %s2 = inlined_call_operand.vmem [shape: f32[1,128], index: 2, kind: input, shape index: {}]
  %s3 = inlined_call_operand.vmem [shape: f32[16,128], index: 3, kind: output, shape index: {}]
  %s4 = sld [smem:[#allocation0]]
  $region22: #{patch_discriminator_forward.11} parent=0
    _
  %s6 = ssub.s32 1, %s4
  %s7 = scalar_select 0, %s6, %s4
  // Predicated region
  $region2: #{patch_discriminator_forward.11} parent=0 // pred_check
    _
  $region3: #{patch_discriminator_forward.11} parent=0 // pred_check_branch
    %9 = sbr.rel (0) target = $region5
  $region4: #{patch_discriminator_forward.11} parent=0 // pred_region
    _
  $region5: #{patch_discriminator_forward.11} parent=0 // pred_fallthru
    _
  // Predicated region
  $region6: #{patch_discriminator_forward.11} parent=0 // pred_check
    _
  $region7: #{patch_discriminator_forward.11} parent=0 // pred_check_branch
    %11 = sbr.rel (0) target = $region9
  $region8: #{patch_discriminator_forward.11} parent=0 // pred_region
    _
  $region9: #{patch_discriminator_forward.11} parent=0 // pred_fallthru
    _
  // Predicated region
  $region10: #{patch_discriminator_forward.11} parent=0 // pred_check
    _
  $region11: #{patch_discriminator_forward.11} parent=0 // pred_check_branch
    %13 = sbr.rel (0) target = $region13
  $region12: #{patch_discriminator_forward.11} parent=0 // pred_region
    _
  $region13: #{patch_discriminator_forward.11} parent=0 // pred_fallthru
    _
  %v15 = vld [vmem:[%s0] sm:$0xff]
  %v16 = vld [vmem:[%s0 + $0x8] sm:$0xff]
  %v17 = vld [vmem:[%s0 + $0x10] sm:$0xff]
  %v18 = vld [vmem:[%s0 + $0x18] sm:$0xff]
  %v19 = vld [vmem:[%s1] sm:$0xf]
  %v20 = vld [vmem:[%s1 + $0x4] sm:$0xf]
  %v21 = vld [vmem:[%s1 + $0x8] sm:$0xf]
  %v22 = vld [vmem:[%s1 + $0xc] sm:$0xf]
  %v23 = vld [vmem:[%s1 + $0x10] sm:$0xf]
  %v24 = vld [vmem:[%s1 + $0x14] sm:$0xf]
  %v25 = vld [vmem:[%s1 + $0x18] sm:$0xf]
  %v26 = vld [vmem:[%s1 + $0x1c] sm:$0xf]
  %v27 = vld [vmem:[%s1 + $0x20] sm:$0xf]
  %v28 = vld [vmem:[%s1 + $0x24] sm:$0xf]
  %v29 = vld [vmem:[%s1 + $0x28] sm:$0xf]
  %v30 = vld [vmem:[%s1 + $0x2c] sm:$0xf]
  %v31 = vld [vmem:[%s1 + $0x30] sm:$0xf]
  %v32 = vld [vmem:[%s1 + $0x34] sm:$0xf]
  %v33 = vld [vmem:[%s1 + $0x38] sm:$0xf]
  %v34 = vld [vmem:[%s1 + $0x3c] sm:$0xf]
  %v35 = vld [vmem:[%s1 + $0x40] sm:$0xf]
  %v36 = vld [vmem:[%s1 + $0x44] sm:$0xf]
  %v37 = vld [vmem:[%s1 + $0x48] sm:$0xf]
  %v38 = vld [vmem:[%s1 + $0x4c] sm:$0xf]
  %v39 = vld [vmem:[%s1 + $0x50] sm:$0xf]
  %v40 = vld [vmem:[%s1 + $0x54] sm:$0xf]
  %v41 = vld [vmem:[%s1 + $0x58] sm:$0xf]
  %v42 = vld [vmem:[%s1 + $0x5c] sm:$0xf]
  %v43 = vld [vmem:[%s1 + $0x60] sm:$0xf]
  %v44 = vld [vmem:[%s1 + $0x64] sm:$0xf]
  %v45 = vld [vmem:[%s1 + $0x68] sm:$0xf]
  %v46 = vld [vmem:[%s1 + $0x6c] sm:$0xf]
  %v47 = vld [vmem:[%s1 + $0x70] sm:$0xf]
  %v48 = vld [vmem:[%s1 + $0x74] sm:$0xf]
  %v49 = vld [vmem:[%s1 + $0x78] sm:$0xf]
  %v50 = vld [vmem:[%s1 + $0x7c] sm:$0xf]
  %v51 = vld [vmem:[%s1 + $0x80] sm:$0xf]
  %v52 = vld [vmem:[%s1 + $0x84] sm:$0xf]
  %v53 = vld [vmem:[%s1 + $0x88] sm:$0xf]
  %v54 = vld [vmem:[%s1 + $0x8c] sm:$0xf]
  %v55 = vld [vmem:[%s1 + $0x90] sm:$0xf]
  %v56 = vld [vmem:[%s1 + $0x94] sm:$0xf]
  %v57 = vld [vmem:[%s1 + $0x98] sm:$0xf]
  %v58 = vld [vmem:[%s1 + $0x9c] sm:$0xf]
  %v59 = vld [vmem:[%s1 + $0xa0] sm:$0xf]
  %v60 = vld [vmem:[%s1 + $0xa4] sm:$0xf]
  %v61 = vld [vmem:[%s1 + $0xa8] sm:$0xf]
  %v62 = vld [vmem:[%s1 + $0xac] sm:$0xf]
  %v63 = vld [vmem:[%s1 + $0xb0] sm:$0xf]
  %v64 = vld [vmem:[%s1 + $0xb4] sm:$0xf]
  %v65 = vld [vmem:[%s1 + $0xb8] sm:$0xf]
  %v66 = vld [vmem:[%s1 + $0xbc] sm:$0xf]
  %v67 = vld [vmem:[%s1 + $0xc0] sm:$0xf]
  %v68 = vld [vmem:[%s1 + $0xc4] sm:$0xf]
  %v69 = vld [vmem:[%s1 + $0xc8] sm:$0xf]
  %v70 = vld [vmem:[%s1 + $0xcc] sm:$0xf]
  %v71 = vld [vmem:[%s1 + $0xd0] sm:$0xf]
  %v72 = vld [vmem:[%s1 + $0xd4] sm:$0xf]
  %v73 = vld [vmem:[%s1 + $0xd8] sm:$0xf]
  %v74 = vld [vmem:[%s1 + $0xdc] sm:$0xf]
  %v75 = vld [vmem:[%s1 + $0xe0] sm:$0xf]
  %v76 = vld [vmem:[%s1 + $0xe4] sm:$0xf]
  %v77 = vld [vmem:[%s1 + $0xe8] sm:$0xf]
  %v78 = vld [vmem:[%s1 + $0xec] sm:$0xf]
  %v79 = vld [vmem:[%s1 + $0xf0] sm:$0xf]
  %v80 = vld [vmem:[%s1 + $0xf4] sm:$0xf]
  %v81 = vld [vmem:[%s1 + $0xf8] sm:$0xf]
  %v82 = vld [vmem:[%s1 + $0xfc] sm:$0xf]
  %v83 = vld [vmem:[%s2] sm:$0x1]
  %v85 = vlaneseq
  %v86 = vshrl.u32 %v85, 7
  %v87 = vsub.s32 0, %v86
  %v88 = vrot.slane %v83, %v87
  %v94 = vunpack.c.l.b16 %v15
  %v95 = vunpack.c.h.b16 %v15
  %v96 = vunpack.c.l.b16 %v16
  %v97 = vunpack.c.h.b16 %v16
  %v98 = vunpack.c.l.b16 %v17
  %v99 = vunpack.c.h.b16 %v17
  %v100 = vunpack.c.l.b16 %v18
  %v101 = vunpack.c.h.b16 %v18
  %v102 = vpack.c.b16 %v98, %v94
  %v103 = vpack.c.b16 %v99, %v95
  %v104 = vpack.c.b16 %v100, %v96
  %v105 = vpack.c.b16 %v101, %v97
  %v174 = vunpack.c.l.b16 %v19
  %v175 = vunpack.c.l.b16 %v20
  %v176 = vunpack.c.l.b16 %v21
  %v177 = vunpack.c.l.b16 %v22
  %v178 = vunpack.c.l.b16 %v23
  %v179 = vunpack.c.l.b16 %v24
  %v180 = vunpack.c.l.b16 %v25
  %v181 = vunpack.c.l.b16 %v26
  %v182 = vunpack.c.l.b16 %v27
  %v183 = vunpack.c.l.b16 %v28
  %v184 = vunpack.c.l.b16 %v29
  %v185 = vunpack.c.l.b16 %v30
  %v186 = vunpack.c.l.b16 %v31
  %v187 = vunpack.c.l.b16 %v32
  %v188 = vunpack.c.l.b16 %v33
  %v189 = vunpack.c.l.b16 %v34
  %v190 = vunpack.c.l.b16 %v35
  %v191 = vunpack.c.l.b16 %v36
  %v192 = vunpack.c.l.b16 %v37
  %v193 = vunpack.c.l.b16 %v38
  %v194 = vunpack.c.l.b16 %v39
  %v195 = vunpack.c.l.b16 %v40
  %v196 = vunpack.c.l.b16 %v41
  %v197 = vunpack.c.l.b16 %v42
  %v198 = vunpack.c.l.b16 %v43
  %v199 = vunpack.c.l.b16 %v44
  %v200 = vunpack.c.l.b16 %v45
  %v201 = vunpack.c.l.b16 %v46
  %v202 = vunpack.c.l.b16 %v47
  %v203 = vunpack.c.l.b16 %v48
  %v204 = vunpack.c.l.b16 %v49
  %v205 = vunpack.c.l.b16 %v50
  %v206 = vunpack.c.l.b16 %v51
  %v207 = vunpack.c.l.b16 %v52
  %v208 = vunpack.c.l.b16 %v53
  %v209 = vunpack.c.l.b16 %v54
  %v210 = vunpack.c.l.b16 %v55
  %v211 = vunpack.c.l.b16 %v56
  %v212 = vunpack.c.l.b16 %v57
  %v213 = vunpack.c.l.b16 %v58
  %v214 = vunpack.c.l.b16 %v59
  %v215 = vunpack.c.l.b16 %v60
  %v216 = vunpack.c.l.b16 %v61
  %v217 = vunpack.c.l.b16 %v62
  %v218 = vunpack.c.l.b16 %v63
  %v219 = vunpack.c.l.b16 %v64
  %v220 = vunpack.c.l.b16 %v65
  %v221 = vunpack.c.l.b16 %v66
  %v222 = vunpack.c.l.b16 %v67
  %v223 = vunpack.c.l.b16 %v68
  %v224 = vunpack.c.l.b16 %v69
  %v225 = vunpack.c.l.b16 %v70
  %v226 = vunpack.c.l.b16 %v71
  %v227 = vunpack.c.l.b16 %v72
  %v228 = vunpack.c.l.b16 %v73
  %v229 = vunpack.c.l.b16 %v74
  %v230 = vunpack.c.l.b16 %v75
  %v231 = vunpack.c.l.b16 %v76
  %v232 = vunpack.c.l.b16 %v77
  %v233 = vunpack.c.l.b16 %v78
  %v234 = vunpack.c.l.b16 %v79
  %v235 = vunpack.c.l.b16 %v80
  %v236 = vunpack.c.l.b16 %v81
  %v237 = vunpack.c.l.b16 %v82
  %v238 = vpack.c.b16 %v175, %v174
  %v239 = vpack.c.b16 %v177, %v176
  %v240 = vpack.c.b16 %v179, %v178
  %v241 = vpack.c.b16 %v181, %v180
  %v242 = vpack.c.b16 %v183, %v182
  %v243 = vpack.c.b16 %v185, %v184
  %v244 = vpack.c.b16 %v187, %v186
  %v245 = vpack.c.b16 %v189, %v188
  %v246 = vpack.c.b16 %v191, %v190
  %v247 = vpack.c.b16 %v193, %v192
  %v248 = vpack.c.b16 %v195, %v194
  %v249 = vpack.c.b16 %v197, %v196
  %v250 = vpack.c.b16 %v199, %v198
  %v251 = vpack.c.b16 %v201, %v200
  %v252 = vpack.c.b16 %v203, %v202
  %v253 = vpack.c.b16 %v205, %v204
  %v254 = vpack.c.b16 %v207, %v206
  %v255 = vpack.c.b16 %v209, %v208
  %v256 = vpack.c.b16 %v211, %v210
  %v257 = vpack.c.b16 %v213, %v212
  %v258 = vpack.c.b16 %v215, %v214
  %v259 = vpack.c.b16 %v217, %v216
  %v260 = vpack.c.b16 %v219, %v218
  %v261 = vpack.c.b16 %v221, %v220
  %v262 = vpack.c.b16 %v223, %v222
  %v263 = vpack.c.b16 %v225, %v224
  %v264 = vpack.c.b16 %v227, %v226
  %v265 = vpack.c.b16 %v229, %v228
  %v266 = vpack.c.b16 %v231, %v230
  %v267 = vpack.c.b16 %v233, %v232
  %v268 = vpack.c.b16 %v235, %v234
  %v269 = vpack.c.b16 %v237, %v236
  %302 = vmatprep.subr.bf16.mxu0 0
  %303 = vmatpush1.bf16.msra.mxu0 %v238
  %304 = vmatprep.subr.bf16.mxu0 0
  %305 = vmatpush1.bf16.msra.mxu0 %v239
  %306 = vmatprep.subr.bf16.mxu0 0
  %307 = vmatpush1.bf16.msra.mxu0 %v240
  %308 = vmatprep.subr.bf16.mxu0 0
  %309 = vmatpush1.bf16.msra.mxu0 %v241
  %310 = vmatprep.subr.bf16.mxu0 0
  %311 = vmatpush1.bf16.msra.mxu0 %v242
  %312 = vmatprep.subr.bf16.mxu0 0
  %313 = vmatpush1.bf16.msra.mxu0 %v243
  %314 = vmatprep.subr.bf16.mxu0 0
  %315 = vmatpush1.bf16.msra.mxu0 %v244
  %316 = vmatprep.subr.bf16.mxu0 0
  %317 = vmatpush1.bf16.msra.mxu0 %v245
  %318 = vmatprep.subr.bf16.mxu0 0
  %319 = vmatpush1.bf16.msra.mxu0 %v246
  %320 = vmatprep.subr.bf16.mxu0 0
  %321 = vmatpush1.bf16.msra.mxu0 %v247
  %322 = vmatprep.subr.bf16.mxu0 0
  %323 = vmatpush1.bf16.msra.mxu0 %v248
  %324 = vmatprep.subr.bf16.mxu0 0
  %325 = vmatpush1.bf16.msra.mxu0 %v249
  %326 = vmatprep.subr.bf16.mxu0 0
  %327 = vmatpush1.bf16.msra.mxu0 %v250
  %328 = vmatprep.subr.bf16.mxu0 0
  %329 = vmatpush1.bf16.msra.mxu0 %v251
  %330 = vmatprep.subr.bf16.mxu0 0
  %331 = vmatpush1.bf16.msra.mxu0 %v252
  %332 = vmatprep.subr.bf16.mxu0 0
  %333 = vmatpush1.bf16.msra.mxu0 %v253
  %334 = vmatprep.mubr.bf16.mxu0 %v103
  %335 = vmatmul.mubr.bf16.gmra.mrb[0].mxu0 %v102
  %v336 = vpop.f32.mrb[0].mxu0
  %v337 = vadd.f32 %v88, %v336
  %v338 = vpop.f32.mrb[0].mxu0
  %v339 = vpop.f32.mrb[0].mxu0
  %v340 = vadd.f32 %v88, %v339
  %v341 = vpop.f32.mrb[0].mxu0
  %342 = vdwg.mxu0
  %343 = vmatprep.subr.bf16.mxu0 0
  %344 = vmatpush1.bf16.msra.mxu0 %v254
  %345 = vmatprep.subr.bf16.mxu0 0
  %346 = vmatpush1.bf16.msra.mxu0 %v255
  %347 = vmatprep.subr.bf16.mxu0 0
  %348 = vmatpush1.bf16.msra.mxu0 %v256
  %349 = vmatprep.subr.bf16.mxu0 0
  %350 = vmatpush1.bf16.msra.mxu0 %v257
  %351 = vmatprep.subr.bf16.mxu0 0
  %352 = vmatpush1.bf16.msra.mxu0 %v258
  %353 = vmatprep.subr.bf16.mxu0 0
  %354 = vmatpush1.bf16.msra.mxu0 %v259
  %355 = vmatprep.subr.bf16.mxu0 0
  %356 = vmatpush1.bf16.msra.mxu0 %v260
  %357 = vmatprep.subr.bf16.mxu0 0
  %358 = vmatpush1.bf16.msra.mxu0 %v261
  %359 = vmatprep.subr.bf16.mxu0 0
  %360 = vmatpush1.bf16.msra.mxu0 %v262
  %361 = vmatprep.subr.bf16.mxu0 0
  %362 = vmatpush1.bf16.msra.mxu0 %v263
  %363 = vmatprep.subr.bf16.mxu0 0
  %364 = vmatpush1.bf16.msra.mxu0 %v264
  %365 = vmatprep.subr.bf16.mxu0 0
  %366 = vmatpush1.bf16.msra.mxu0 %v265
  %367 = vmatprep.subr.bf16.mxu0 0
  %368 = vmatpush1.bf16.msra.mxu0 %v266
  %369 = vmatprep.subr.bf16.mxu0 0
  %370 = vmatpush1.bf16.msra.mxu0 %v267
  %371 = vmatprep.subr.bf16.mxu0 0
  %372 = vmatpush1.bf16.msra.mxu0 %v268
  %373 = vmatprep.subr.bf16.mxu0 0
  %374 = vmatpush1.bf16.msra.mxu0 %v269
  %375 = vmatprep.mubr.bf16.mxu0 %v105
  %376 = vmatmul.mubr.bf16.gmra.mrb[0].mxu0 %v104
  %v377 = vpop.f32.mrb[0].mxu0
  %v378 = vadd.f32 %v337, %v377
  %v379 = vpop.f32.mrb[0].mxu0
  %v380 = vpop.f32.mrb[0].mxu0
  %v381 = vadd.f32 %v340, %v380
  %v382 = vpop.f32.mrb[0].mxu0
  %383 = vdwg.mxu0
  %384 = vst [vmem:[%s3] sm:$0xff] %v378
  %385 = vst [vmem:[%s3 + $0x8] sm:$0xff] %v381
  // Predicated region
  $region14: #{patch_discriminator_forward.11} parent=0 // pred_check
    _
  $region15: #{patch_discriminator_forward.11} parent=0 // pred_check_branch
    %387 = sbr.rel (0) target = $region17
  $region16: #{patch_discriminator_forward.11} parent=0 // pred_region
    _
  $region17: #{patch_discriminator_forward.11} parent=0 // pred_fallthru
    _
  // Predicated region
  $region18: #{patch_discriminator_forward.11} parent=0 // pred_check
    _
  $region19: #{patch_discriminator_forward.11} parent=0 // pred_check_branch
    %389 = sbr.rel (0) target = $region21
  $region20: #{patch_discriminator_forward.11} parent=0 // pred_region
    _
  $region21: #{patch_discriminator_forward.11} parent=0 // pred_fallthru
    _

</llo_original>
